<compile_context>
chip_gen: v5e
topology: v5e:2x2
jax: 0.10.0
libtpu: 0.0.40
codegen_flags: <defaults>
</compile_context>

<pallas_src>
import functools
import numpy as np
import jax
import jax.numpy as jnp
from jax.experimental import pallas as pl
from jax.experimental.pallas import tpu as pltpu

# ---------------- configuration (p_model_normalizing_flow) -------------------
NFEATURES = 8          # flattened feature count of x_t / v_t
X_EMB = 32             # x_emb_size      (x_emb_type = 'mlp')
T_EMB = 32             # time_emb_size   (time_emb_type = 'learnable')
WIDTH = 64             # hidden_width
DEPTH = 2              # hidden_depth  -> hidden_features = [WIDTH, WIDTH]
TRANSFORMS = 3         # number of MAF transforms
CTX = X_EMB + T_EMB
NIN = 2 * NFEATURES + 1            # packed input rows: [x | v | t]
HEAD = 24                          # fused head rows: 8 shift, 8 log_scale, 1 ladj, 7 pad
LOG2PI = float(np.log(2.0 * np.pi))


def silu(x):
    # x * sigmoid(x), with sigmoid expressed via tanh:
    # one EUP transcendental per element, no VPU divide.
    h = 0.5 * x
    return h + h * jnp.tanh(h)


# ------------------------------- Pallas kernel -------------------------------
def nf_kernel(xvt_ref,                                   # (NIN, TILE_B) packed [x; v; t]
              xw1, xb1, xw2, xb2, xw3, xb3,              # x_mlp    (out, in) / (out, 1)
              tw1, tb1, tw2, tb2, tw3, tb3,              # time_mlp (out, in) / (out, 1)
              fw1z,                                      # (T, WIDTH, F)   masked z weights
              fw1cx, fw1ct, fb1,                         # hoisted context proj (3W, X/T/1)
              fw2, fb2,                                  # (T, WIDTH, WIDTH), (T, WIDTH, 1)
              fwh, fbh,                                  # fused head (T, HEAD, WIDTH/1)
              out_ref):                                  # (1, TILE_B)
    dot = functools.partial(jnp.dot, preferred_element_type=jnp.float32)

    x = xvt_ref[0:NFEATURES, :]                          # (F, TB)
    v = xvt_ref[NFEATURES:2 * NFEATURES, :]              # (F, TB)
    t = xvt_ref[2 * NFEATURES:NIN, :]                    # (1, TB)

    # x embedding MLP: Linear->SiLU x3   (y = W @ h + b, batch on lanes)
    h = silu(dot(xw1[...], x) + xb1[...])
    h = silu(dot(xw2[...], h) + xb2[...])
    xe = silu(dot(xw3[...], h) + xb3[...])               # (X_EMB, TB)

    # time embedding MLP; first layer has in_features=1 -> VPU broadcast, no MXU pass
    g = silu(tw1[...] * t + tb1[...])                    # (T_EMB, TB)
    g = silu(dot(tw2[...], g) + tb2[...])
    te = silu(dot(tw3[...], g) + tb3[...])               # (T_EMB, TB)

    # context projections of ALL transforms, hoisted out of the transform loop
    ctx_proj = dot(fw1cx[...], xe) + dot(fw1ct[...], te) + fb1[...]   # (3*WIDTH, TB)

    # MAF log_prob over v, conditioned on context [xe, te]
    z = v
    ladj = jnp.zeros_like(t)                             # (1, TB)
    for k in range(TRANSFORMS):                          # static unrolled loop
        h = silu(dot(fw1z[k], z) + ctx_proj[k * WIDTH:(k + 1) * WIDTH, :])
        h = silu(dot(fw2[k], h) + fb2[k])
        head = dot(fwh[k], h) + fbh[k]                   # (HEAD, TB) fused head
        shift = head[0:NFEATURES, :]                     # (F, TB)
        log_scale = head[NFEATURES:2 * NFEATURES, :]     # (F, TB)
        # TODO(synk): zuko.MonotonicAffineTransform soft-clamps log_scale; plain exp used here.
        z = z * jnp.exp(log_scale) + shift
        # row 2F of the fused head is (sum_j Wl[j]) @ h + sum_j bl[j] == sum(log_scale)
        ladj = ladj + head[2 * NFEATURES:2 * NFEATURES + 1, :]

    ones_f = jnp.ones((1, NFEATURES), jnp.float32)
    sumsq = dot(ones_f, z * z)                           # (1, TB), lane-dense row reduce
    out_ref[...] = -0.5 * sumsq - 0.5 * NFEATURES * LOG2PI + ladj


# --------------------------------- wrapper ------------------------------------
def _round_up(n, m):
    return ((n + m - 1) // m) * m


def normalizing_flow_log_prob(x_t, v_t, t, kernel_params, max_tile_b=1024):
    B = x_t.shape[0]
    x2 = x_t.reshape(B, -1).astype(jnp.float32)
    v2 = v_t.reshape(B, -1).astype(jnp.float32)
    t2 = t.reshape(-1, 1).astype(jnp.float32)
    # pack the three narrow inputs into ONE array, batch on lanes
    xvt = jnp.concatenate([x2, v2, t2], axis=1).T        # (NIN, B)

    tile_b = min(max_tile_b, _round_up(B, 128))          # lane-aligned batch tile
    num_tiles = pl.cdiv(B, tile_b)
    b_pad = num_tiles * tile_b
    if b_pad != B:
        xvt = jnp.pad(xvt, ((0, 0), (0, b_pad - B)))

    in_specs = [pl.BlockSpec((NIN, tile_b), lambda i: (0, i))]
    # weights: full-array blocks with constant index_map -> fetched once, stay resident
    for w in kernel_params:
        in_specs.append(pl.BlockSpec(w.shape, lambda i, nd=w.ndim: (0,) * nd))

    out = pl.pallas_call(
        nf_kernel,
        out_shape=jax.ShapeDtypeStruct((1, b_pad), jnp.float32),
        grid_spec=pltpu.PrefetchScalarGridSpec(
            num_scalar_prefetch=0,
            grid=(num_tiles,),
            in_specs=in_specs,
            out_specs=pl.BlockSpec((1, tile_b), lambda i: (0, i)),
        ),
        compiler_params=pltpu.CompilerParams(
            dimension_semantics=("parallel",),
            vmem_limit_bytes=32 * 1024 * 1024),
    )(xvt, *kernel_params)
    return out[0, :B]                                    # (B,) like torch log_prob


# ----------------------- deterministic parameter setup ------------------------
def _uni(key, shape, bound):
    return jax.random.uniform(key, shape, jnp.float32, -bound, bound)


def _linear(key, fan_in, fan_out):
    kw, kb = jax.random.split(key)
    bound = 1.0 / np.sqrt(fan_in)
    return _uni(kw, (fan_in, fan_out), bound), _uni(kb, (1, fan_out), bound)


def build_params(key):
    keys = jax.random.split(key, 16)
    xw1, xb1 = _linear(keys[0], NFEATURES, X_EMB)
    xw2, xb2 = _linear(keys[1], X_EMB, X_EMB)
    xw3, xb3 = _linear(keys[2], X_EMB, X_EMB)
    tw1, tb1 = _linear(keys[3], 1, T_EMB)
    tw2, tb2 = _linear(keys[4], T_EMB, T_EMB)
    tw3, tb3 = _linear(keys[5], T_EMB, T_EMB)

    fw1z, fw1x, fw1t, fb1 = [], [], [], []
    fw2, fb2, fws, fbs, fwl, fbl = [], [], [], [], [], []
    for k in range(TRANSFORMS):
        # alternate autoregressive order (identity / reversed), as zuko's MAF does
        order = np.arange(NFEATURES) if k % 2 == 0 else np.arange(NFEATURES)[::-1].copy()
        # MADE degrees: hidden degrees span -1..F-2 (-1 units see only the context)
        deg_h = (np.arange(WIDTH) % NFEATURES) - 1
        m_in = (deg_h[None, :] >= order[:, None]).astype(np.float32)   # (F, W)
        m_hh = (deg_h[None, :] >= deg_h[:, None]).astype(np.float32)   # (W, W)
        m_out = (order[None, :] > deg_h[:, None]).astype(np.float32)   # (W, F)

        kk = jax.random.split(keys[6 + k], 10)
        b_in = 1.0 / np.sqrt(NFEATURES + CTX)
        b_h = 1.0 / np.sqrt(WIDTH)
        fw1z.append(_uni(kk[0], (NFEATURES, WIDTH), b_in) * m_in)
        fw1x.append(_uni(kk[1], (X_EMB, WIDTH), b_in))
        fw1t.append(_uni(kk[2], (T_EMB, WIDTH), b_in))
        fb1.append(_uni(kk[3], (1, WIDTH), b_in))
        fw2.append(_uni(kk[4], (WIDTH, WIDTH), b_h) * m_hh)
        fb2.append(_uni(kk[5], (1, WIDTH), b_h))
        fws.append(_uni(kk[6], (WIDTH, NFEATURES), b_h) * m_out)
        fbs.append(_uni(kk[7], (1, NFEATURES), b_h))
        fwl.append(_uni(kk[8], (WIDTH, NFEATURES), b_h) * m_out * 0.1)
        fbl.append(_uni(kk[9], (1, NFEATURES), b_h) * 0.1)

    stk = lambda lst: jnp.stack(lst, axis=0)
    return (xw1, xb1, xw2, xb2, xw3, xb3,
            tw1, tb1, tw2, tb2, tw3, tb3,
            stk(fw1z), stk(fw1x), stk(fw1t), stk(fb1),
            stk(fw2), stk(fb2), stk(fws), stk(fbs), stk(fwl), stk(fbl))


# ------------- host-side repack: transpose / fuse weights for the kernel -------------
def pack_kernel_params(p):
    (xw1, xb1, xw2, xb2, xw3, xb3,
     tw1, tb1, tw2, tb2, tw3, tb3,
     fw1z, fw1x, fw1t, fb1, fw2, fb2, fws, fbs, fwl, fbl) = p
    T = lambda a: jnp.asarray(a).T                       # (in,out)->(out,in); (1,o)->(o,1)

    # hoisted context-projection weights: stack the 3 transforms along output rows
    fw1cx = jnp.concatenate([T(fw1x[k]) for k in range(TRANSFORMS)], axis=0)  # (3W, X_EMB)
    fw1ct = jnp.concatenate([T(fw1t[k]) for k in range(TRANSFORMS)], axis=0)  # (3W, T_EMB)
    fb1c = jnp.concatenate([T(fb1[k]) for k in range(TRANSFORMS)], axis=0)    # (3W, 1)

    fw1z_t = jnp.stack([T(fw1z[k]) for k in range(TRANSFORMS)], axis=0)       # (T, W, F)
    fw2_t = jnp.stack([T(fw2[k]) for k in range(TRANSFORMS)], axis=0)         # (T, W, W)
    fb2_c = jnp.stack([T(fb2[k]) for k in range(TRANSFORMS)], axis=0)         # (T, W, 1)

    # fused head: rows 0:8 shift, 8:16 log_scale, 16 = column-sum of log_scale head
    # (so sum_j log_scale_j comes out of the same matmul), rows 17:24 zero padding.
    hw, hb = [], []
    npad = HEAD - (2 * NFEATURES + 1)
    for k in range(TRANSFORMS):
        ws, wl = T(fws[k]), T(fwl[k])                    # (F, W)
        bs, bl = T(fbs[k]), T(fbl[k])                    # (F, 1)
        wsum = jnp.sum(wl, axis=0, keepdims=True)        # (1, W)
        bsum = jnp.sum(bl, axis=0, keepdims=True)        # (1, 1)
        hw.append(jnp.concatenate(
            [ws, wl, wsum, jnp.zeros((npad, WIDTH), jnp.float32)], axis=0))   # (HEAD, W)
        hb.append(jnp.concatenate(
            [bs, bl, bsum, jnp.zeros((npad, 1), jnp.float32)], axis=0))       # (HEAD, 1)
    fwh = jnp.stack(hw, axis=0)                          # (T, HEAD, W)
    fbh = jnp.stack(hb, axis=0)                          # (T, HEAD, 1)

    return (T(xw1), T(xb1), T(xw2), T(xb2), T(xw3), T(xb3),
            T(tw1), T(tb1), T(tw2), T(tb2), T(tw3), T(tb3),
            fw1z_t, fw1cx, fw1ct, fb1c,
            fw2_t, fb2_c, fwh, fbh)


# --------------------------- pure-JAX reference -------------------------------
def reference_log_prob(x_t, v_t, t, p):
    (xw1, xb1, xw2, xb2, xw3, xb3,
     tw1, tb1, tw2, tb2, tw3, tb3,
     fw1z, fw1x, fw1t, fb1, fw2, fb2, fws, fbs, fwl, fbl) = p
    ref_silu = lambda x: x * (1.0 / (1.0 + jnp.exp(-x)))
    B = x_t.shape[0]
    x = x_t.reshape(B, -1).astype(jnp.float32)
    v = v_t.reshape(B, -1).astype(jnp.float32)
    tt = t.reshape(-1, 1).astype(jnp.float32)
    h = ref_silu(x @ xw1 + xb1); h = ref_silu(h @ xw2 + xb2); xe = ref_silu(h @ xw3 + xb3)
    g = ref_silu(tt @ tw1 + tb1); g = ref_silu(g @ tw2 + tb2); te = ref_silu(g @ tw3 + tb3)
    z = v
    ladj = jnp.zeros((B, 1), jnp.float32)
    for k in range(TRANSFORMS):
        h = ref_silu(z @ fw1z[k] + xe @ fw1x[k] + te @ fw1t[k] + fb1[k])
        h = ref_silu(h @ fw2[k] + fb2[k])
        shift = h @ fws[k] + fbs[k]
        log_scale = h @ fwl[k] + fbl[k]
        z = z * jnp.exp(log_scale) + shift
        ladj = ladj + jnp.sum(log_scale, axis=-1, keepdims=True)
    lp = -0.5 * jnp.sum(z * z, axis=-1, keepdims=True) - 0.5 * NFEATURES * LOG2PI + ladj
    return lp[:, 0]


# ------------------------------------ main ------------------------------------
if __name__ == "__main__":
    root = jax.random.PRNGKey(0)
    kp, kx, kv, kt = jax.random.split(root, 4)
    params = build_params(kp)
    kparams = pack_kernel_params(params)

    B = 2
    # x_t / v_t carry an arbitrary feature shape that flattens to NFEATURES=8
    x_t = jax.random.normal(kx, (B, 2, 2, 2), jnp.float32)
    v_t = jax.random.normal(kv, (B, 2, 2, 2), jnp.float32)
    t = jax.random.uniform(kt, (B,), jnp.float32)

    out = normalizing_flow_log_prob(x_t, v_t, t, kparams)
    out = jax.block_until_ready(out)

    ref = reference_log_prob(x_t, v_t, t, params)
    assert out.shape == (B,)
    assert jnp.allclose(out, ref, rtol=1e-4, atol=1e-3), (out, ref)
    print("KERNEL_OK")
</pallas_src>

<mosaic_0001>
module attributes {stable_mosaic.version = 11 : i64} {
  func.func @nf_kernel(%arg0: i32, %arg1: memref<17x128xf32, #tpu.memory_space<vmem>>, %arg2: memref<32x8xf32, #tpu.memory_space<vmem>>, %arg3: memref<32x1xf32, #tpu.memory_space<vmem>>, %arg4: memref<32x32xf32, #tpu.memory_space<vmem>>, %arg5: memref<32x1xf32, #tpu.memory_space<vmem>>, %arg6: memref<32x32xf32, #tpu.memory_space<vmem>>, %arg7: memref<32x1xf32, #tpu.memory_space<vmem>>, %arg8: memref<32x1xf32, #tpu.memory_space<vmem>>, %arg9: memref<32x1xf32, #tpu.memory_space<vmem>>, %arg10: memref<32x32xf32, #tpu.memory_space<vmem>>, %arg11: memref<32x1xf32, #tpu.memory_space<vmem>>, %arg12: memref<32x32xf32, #tpu.memory_space<vmem>>, %arg13: memref<32x1xf32, #tpu.memory_space<vmem>>, %arg14: memref<3x64x8xf32, #tpu.memory_space<vmem>>, %arg15: memref<192x32xf32, #tpu.memory_space<vmem>>, %arg16: memref<192x32xf32, #tpu.memory_space<vmem>>, %arg17: memref<192x1xf32, #tpu.memory_space<vmem>>, %arg18: memref<3x64x64xf32, #tpu.memory_space<vmem>>, %arg19: memref<3x64x1xf32, #tpu.memory_space<vmem>>, %arg20: memref<3x24x64xf32, #tpu.memory_space<vmem>>, %arg21: memref<3x24x1xf32, #tpu.memory_space<vmem>>, %arg22: memref<1x128xf32, #tpu.memory_space<vmem>>) attributes {dimension_semantics = [#tpu.dimension_semantics<parallel>], iteration_bounds = array<i64: 1>, scalar_prefetch = 0 : i64, scratch_operands = 0 : i64, tpu.core_type = #tpu.core_type<tc>, window_params = [{transform_indices = @transform_0, window_bounds = array<i64: 17, 128>}, {pipeline_mode = #tpu.pipeline_mode<synchronous>, transform_indices = @transform_1, window_bounds = array<i64: 32, 8>}, {pipeline_mode = #tpu.pipeline_mode<synchronous>, transform_indices = @transform_2, window_bounds = array<i64: 32, 1>}, {pipeline_mode = #tpu.pipeline_mode<synchronous>, transform_indices = @transform_3, window_bounds = array<i64: 32, 32>}, {pipeline_mode = #tpu.pipeline_mode<synchronous>, transform_indices = @transform_4, window_bounds = array<i64: 32, 1>}, {pipeline_mode = #tpu.pipeline_mode<synchronous>, transform_indices = @transform_5, window_bounds = array<i64: 32, 32>}, {pipeline_mode = #tpu.pipeline_mode<synchronous>, transform_indices = @transform_6, window_bounds = array<i64: 32, 1>}, {pipeline_mode = #tpu.pipeline_mode<synchronous>, transform_indices = @transform_7, window_bounds = array<i64: 32, 1>}, {pipeline_mode = #tpu.pipeline_mode<synchronous>, transform_indices = @transform_8, window_bounds = array<i64: 32, 1>}, {pipeline_mode = #tpu.pipeline_mode<synchronous>, transform_indices = @transform_9, window_bounds = array<i64: 32, 32>}, {pipeline_mode = #tpu.pipeline_mode<synchronous>, transform_indices = @transform_10, window_bounds = array<i64: 32, 1>}, {pipeline_mode = #tpu.pipeline_mode<synchronous>, transform_indices = @transform_11, window_bounds = array<i64: 32, 32>}, {pipeline_mode = #tpu.pipeline_mode<synchronous>, transform_indices = @transform_12, window_bounds = array<i64: 32, 1>}, {pipeline_mode = #tpu.pipeline_mode<synchronous>, transform_indices = @transform_13, window_bounds = array<i64: 3, 64, 8>}, {pipeline_mode = #tpu.pipeline_mode<synchronous>, transform_indices = @transform_14, window_bounds = array<i64: 192, 32>}, {pipeline_mode = #tpu.pipeline_mode<synchronous>, transform_indices = @transform_15, window_bounds = array<i64: 192, 32>}, {pipeline_mode = #tpu.pipeline_mode<synchronous>, transform_indices = @transform_16, window_bounds = array<i64: 192, 1>}, {pipeline_mode = #tpu.pipeline_mode<synchronous>, transform_indices = @transform_17, window_bounds = array<i64: 3, 64, 64>}, {pipeline_mode = #tpu.pipeline_mode<synchronous>, transform_indices = @transform_18, window_bounds = array<i64: 3, 64, 1>}, {pipeline_mode = #tpu.pipeline_mode<synchronous>, transform_indices = @transform_19, window_bounds = array<i64: 3, 24, 64>}, {pipeline_mode = #tpu.pipeline_mode<synchronous>, transform_indices = @transform_20, window_bounds = array<i64: 3, 24, 1>}, {transform_indices = @transform_21, window_bounds = array<i64: 1, 128>}]} {
    %c0 = arith.constant 0 : index
    %c0_0 = arith.constant 0 : index
    %0 = vector.load %arg1[%c0, %c0_0] : memref<17x128xf32, #tpu.memory_space<vmem>>, vector<8x128xf32>
    %c8 = arith.constant 8 : index
    %c0_1 = arith.constant 0 : index
    %1 = vector.load %arg1[%c8, %c0_1] : memref<17x128xf32, #tpu.memory_space<vmem>>, vector<8x128xf32>
    %c16 = arith.constant 16 : index
    %c0_2 = arith.constant 0 : index
    %2 = vector.load %arg1[%c16, %c0_2] : memref<17x128xf32, #tpu.memory_space<vmem>>, vector<1x128xf32>
    %c0_3 = arith.constant 0 : index
    %c0_4 = arith.constant 0 : index
    %3 = vector.load %arg2[%c0_3, %c0_4] : memref<32x8xf32, #tpu.memory_space<vmem>>, vector<32x8xf32>
    %cst = arith.constant dense<0.000000e+00> : vector<32x128xf32>
    %4 = tpu.matmul %3, %0, %cst {dimension_numbers = #tpu.dot_dimension_numbers<[1], [0], [0], [1], [0, 0, 1, 1], [], []>} : vector<32x8xf32>, vector<8x128xf32>, vector<32x128xf32> -> vector<32x128xf32>
    %c0_5 = arith.constant 0 : index
    %c0_6 = arith.constant 0 : index
    %5 = vector.load %arg3[%c0_5, %c0_6] : memref<32x1xf32, #tpu.memory_space<vmem>>, vector<32x1xf32>
    %6 = vector.broadcast %5 : vector<32x1xf32> to vector<32x128xf32>
    %7 = arith.addf %4, %6 : vector<32x128xf32>
    %cst_7 = arith.constant 5.000000e-01 : f32
    %8 = vector.broadcast %cst_7 : f32 to vector<32x128xf32>
    %9 = arith.mulf %8, %7 : vector<32x128xf32>
    %10 = math.tanh %9 : vector<32x128xf32>
    %11 = arith.mulf %9, %10 : vector<32x128xf32>
    %12 = arith.addf %9, %11 : vector<32x128xf32>
    %c0_8 = arith.constant 0 : index
    %c0_9 = arith.constant 0 : index
    %13 = vector.load %arg4[%c0_8, %c0_9] : memref<32x32xf32, #tpu.memory_space<vmem>>, vector<32x32xf32>
    %cst_10 = arith.constant dense<0.000000e+00> : vector<32x128xf32>
    %14 = tpu.matmul %13, %12, %cst_10 {dimension_numbers = #tpu.dot_dimension_numbers<[1], [0], [0], [1], [0, 0, 1, 1], [], []>} : vector<32x32xf32>, vector<32x128xf32>, vector<32x128xf32> -> vector<32x128xf32>
    %c0_11 = arith.constant 0 : index
    %c0_12 = arith.constant 0 : index
    %15 = vector.load %arg5[%c0_11, %c0_12] : memref<32x1xf32, #tpu.memory_space<vmem>>, vector<32x1xf32>
    %16 = vector.broadcast %15 : vector<32x1xf32> to vector<32x128xf32>
    %17 = arith.addf %14, %16 : vector<32x128xf32>
    %cst_13 = arith.constant 5.000000e-01 : f32
    %18 = vector.broadcast %cst_13 : f32 to vector<32x128xf32>
    %19 = arith.mulf %18, %17 : vector<32x128xf32>
    %20 = math.tanh %19 : vector<32x128xf32>
    %21 = arith.mulf %19, %20 : vector<32x128xf32>
    %22 = arith.addf %19, %21 : vector<32x128xf32>
    %c0_14 = arith.constant 0 : index
    %c0_15 = arith.constant 0 : index
    %23 = vector.load %arg6[%c0_14, %c0_15] : memref<32x32xf32, #tpu.memory_space<vmem>>, vector<32x32xf32>
    %cst_16 = arith.constant dense<0.000000e+00> : vector<32x128xf32>
    %24 = tpu.matmul %23, %22, %cst_16 {dimension_numbers = #tpu.dot_dimension_numbers<[1], [0], [0], [1], [0, 0, 1, 1], [], []>} : vector<32x32xf32>, vector<32x128xf32>, vector<32x128xf32> -> vector<32x128xf32>
    %c0_17 = arith.constant 0 : index
    %c0_18 = arith.constant 0 : index
    %25 = vector.load %arg7[%c0_17, %c0_18] : memref<32x1xf32, #tpu.memory_space<vmem>>, vector<32x1xf32>
    %26 = vector.broadcast %25 : vector<32x1xf32> to vector<32x128xf32>
    %27 = arith.addf %24, %26 : vector<32x128xf32>
    %cst_19 = arith.constant 5.000000e-01 : f32
    %28 = vector.broadcast %cst_19 : f32 to vector<32x128xf32>
    %29 = arith.mulf %28, %27 : vector<32x128xf32>
    %30 = math.tanh %29 : vector<32x128xf32>
    %31 = arith.mulf %29, %30 : vector<32x128xf32>
    %32 = arith.addf %29, %31 : vector<32x128xf32>
    %c0_20 = arith.constant 0 : index
    %c0_21 = arith.constant 0 : index
    %33 = vector.load %arg8[%c0_20, %c0_21] : memref<32x1xf32, #tpu.memory_space<vmem>>, vector<32x1xf32>
    %34 = vector.broadcast %33 : vector<32x1xf32> to vector<32x128xf32>
    %35 = vector.broadcast %2 : vector<1x128xf32> to vector<32x128xf32>
    %36 = arith.mulf %34, %35 : vector<32x128xf32>
    %c0_22 = arith.constant 0 : index
    %c0_23 = arith.constant 0 : index
    %37 = vector.load %arg9[%c0_22, %c0_23] : memref<32x1xf32, #tpu.memory_space<vmem>>, vector<32x1xf32>
    %38 = vector.broadcast %37 : vector<32x1xf32> to vector<32x128xf32>
    %39 = arith.addf %36, %38 : vector<32x128xf32>
    %cst_24 = arith.constant 5.000000e-01 : f32
    %40 = vector.broadcast %cst_24 : f32 to vector<32x128xf32>
    %41 = arith.mulf %40, %39 : vector<32x128xf32>
    %42 = math.tanh %41 : vector<32x128xf32>
    %43 = arith.mulf %41, %42 : vector<32x128xf32>
    %44 = arith.addf %41, %43 : vector<32x128xf32>
    %c0_25 = arith.constant 0 : index
    %c0_26 = arith.constant 0 : index
    %45 = vector.load %arg10[%c0_25, %c0_26] : memref<32x32xf32, #tpu.memory_space<vmem>>, vector<32x32xf32>
    %cst_27 = arith.constant dense<0.000000e+00> : vector<32x128xf32>
    %46 = tpu.matmul %45, %44, %cst_27 {dimension_numbers = #tpu.dot_dimension_numbers<[1], [0], [0], [1], [0, 0, 1, 1], [], []>} : vector<32x32xf32>, vector<32x128xf32>, vector<32x128xf32> -> vector<32x128xf32>
    %c0_28 = arith.constant 0 : index
    %c0_29 = arith.constant 0 : index
    %47 = vector.load %arg11[%c0_28, %c0_29] : memref<32x1xf32, #tpu.memory_space<vmem>>, vector<32x1xf32>
    %48 = vector.broadcast %47 : vector<32x1xf32> to vector<32x128xf32>
    %49 = arith.addf %46, %48 : vector<32x128xf32>
    %cst_30 = arith.constant 5.000000e-01 : f32
    %50 = vector.broadcast %cst_30 : f32 to vector<32x128xf32>
    %51 = arith.mulf %50, %49 : vector<32x128xf32>
    %52 = math.tanh %51 : vector<32x128xf32>
    %53 = arith.mulf %51, %52 : vector<32x128xf32>
    %54 = arith.addf %51, %53 : vector<32x128xf32>
    %c0_31 = arith.constant 0 : index
    %c0_32 = arith.constant 0 : index
    %55 = vector.load %arg12[%c0_31, %c0_32] : memref<32x32xf32, #tpu.memory_space<vmem>>, vector<32x32xf32>
    %cst_33 = arith.constant dense<0.000000e+00> : vector<32x128xf32>
    %56 = tpu.matmul %55, %54, %cst_33 {dimension_numbers = #tpu.dot_dimension_numbers<[1], [0], [0], [1], [0, 0, 1, 1], [], []>} : vector<32x32xf32>, vector<32x128xf32>, vector<32x128xf32> -> vector<32x128xf32>
    %c0_34 = arith.constant 0 : index
    %c0_35 = arith.constant 0 : index
    %57 = vector.load %arg13[%c0_34, %c0_35] : memref<32x1xf32, #tpu.memory_space<vmem>>, vector<32x1xf32>
    %58 = vector.broadcast %57 : vector<32x1xf32> to vector<32x128xf32>
    %59 = arith.addf %56, %58 : vector<32x128xf32>
    %cst_36 = arith.constant 5.000000e-01 : f32
    %60 = vector.broadcast %cst_36 : f32 to vector<32x128xf32>
    %61 = arith.mulf %60, %59 : vector<32x128xf32>
    %62 = math.tanh %61 : vector<32x128xf32>
    %63 = arith.mulf %61, %62 : vector<32x128xf32>
    %64 = arith.addf %61, %63 : vector<32x128xf32>
    %c0_37 = arith.constant 0 : index
    %c0_38 = arith.constant 0 : index
    %65 = vector.load %arg15[%c0_37, %c0_38] : memref<192x32xf32, #tpu.memory_space<vmem>>, vector<192x32xf32>
    %cst_39 = arith.constant dense<0.000000e+00> : vector<192x128xf32>
    %66 = tpu.matmul %65, %32, %cst_39 {dimension_numbers = #tpu.dot_dimension_numbers<[1], [0], [0], [1], [0, 0, 1, 1], [], []>} : vector<192x32xf32>, vector<32x128xf32>, vector<192x128xf32> -> vector<192x128xf32>
    %c0_40 = arith.constant 0 : index
    %c0_41 = arith.constant 0 : index
    %67 = vector.load %arg16[%c0_40, %c0_41] : memref<192x32xf32, #tpu.memory_space<vmem>>, vector<192x32xf32>
    %cst_42 = arith.constant dense<0.000000e+00> : vector<192x128xf32>
    %68 = tpu.matmul %67, %64, %cst_42 {dimension_numbers = #tpu.dot_dimension_numbers<[1], [0], [0], [1], [0, 0, 1, 1], [], []>} : vector<192x32xf32>, vector<32x128xf32>, vector<192x128xf32> -> vector<192x128xf32>
    %69 = arith.addf %66, %68 : vector<192x128xf32>
    %c0_43 = arith.constant 0 : index
    %c0_44 = arith.constant 0 : index
    %70 = vector.load %arg17[%c0_43, %c0_44] : memref<192x1xf32, #tpu.memory_space<vmem>>, vector<192x1xf32>
    %71 = vector.broadcast %70 : vector<192x1xf32> to vector<192x128xf32>
    %72 = arith.addf %69, %71 : vector<192x128xf32>
    %cst_45 = arith.constant 0.000000e+00 : f32
    %73 = vector.broadcast %cst_45 : f32 to vector<1x128xf32>
    %c0_46 = arith.constant 0 : index
    %c0_47 = arith.constant 0 : index
    %c0_48 = arith.constant 0 : index
    %74 = vector.load %arg14[%c0_46, %c0_47, %c0_48] : memref<3x64x8xf32, #tpu.memory_space<vmem>>, vector<1x64x8xf32>
    %75 = vector.shape_cast %74 : vector<1x64x8xf32> to vector<64x8xf32>
    %cst_49 = arith.constant dense<0.000000e+00> : vector<64x128xf32>
    %76 = tpu.matmul %75, %1, %cst_49 {dimension_numbers = #tpu.dot_dimension_numbers<[1], [0], [0], [1], [0, 0, 1, 1], [], []>} : vector<64x8xf32>, vector<8x128xf32>, vector<64x128xf32> -> vector<64x128xf32>
    %77 = vector.extract_strided_slice %72 {offsets = [0, 0], sizes = [64, 128], strides = [1, 1]} : vector<192x128xf32> to vector<64x128xf32>
    %78 = arith.addf %76, %77 : vector<64x128xf32>
    %cst_50 = arith.constant 5.000000e-01 : f32
    %79 = vector.broadcast %cst_50 : f32 to vector<64x128xf32>
    %80 = arith.mulf %79, %78 : vector<64x128xf32>
    %81 = math.tanh %80 : vector<64x128xf32>
    %82 = arith.mulf %80, %81 : vector<64x128xf32>
    %83 = arith.addf %80, %82 : vector<64x128xf32>
    %c0_51 = arith.constant 0 : index
    %c0_52 = arith.constant 0 : index
    %c0_53 = arith.constant 0 : index
    %84 = vector.load %arg18[%c0_51, %c0_52, %c0_53] : memref<3x64x64xf32, #tpu.memory_space<vmem>>, vector<1x64x64xf32>
    %85 = vector.shape_cast %84 : vector<1x64x64xf32> to vector<64x64xf32>
    %cst_54 = arith.constant dense<0.000000e+00> : vector<64x128xf32>
    %86 = tpu.matmul %85, %83, %cst_54 {dimension_numbers = #tpu.dot_dimension_numbers<[1], [0], [0], [1], [0, 0, 1, 1], [], []>} : vector<64x64xf32>, vector<64x128xf32>, vector<64x128xf32> -> vector<64x128xf32>
    %c0_55 = arith.constant 0 : index
    %c0_56 = arith.constant 0 : index
    %c0_57 = arith.constant 0 : index
    %87 = vector.load %arg19[%c0_55, %c0_56, %c0_57] : memref<3x64x1xf32, #tpu.memory_space<vmem>>, vector<1x64x1xf32>
    %88 = vector.shape_cast %87 : vector<1x64x1xf32> to vector<64x1xf32>
    %89 = vector.broadcast %88 : vector<64x1xf32> to vector<64x128xf32>
    %90 = arith.addf %86, %89 : vector<64x128xf32>
    %cst_58 = arith.constant 5.000000e-01 : f32
    %91 = vector.broadcast %cst_58 : f32 to vector<64x128xf32>
    %92 = arith.mulf %91, %90 : vector<64x128xf32>
    %93 = math.tanh %92 : vector<64x128xf32>
    %94 = arith.mulf %92, %93 : vector<64x128xf32>
    %95 = arith.addf %92, %94 : vector<64x128xf32>
    %c0_59 = arith.constant 0 : index
    %c0_60 = arith.constant 0 : index
    %c0_61 = arith.constant 0 : index
    %96 = vector.load %arg20[%c0_59, %c0_60, %c0_61] : memref<3x24x64xf32, #tpu.memory_space<vmem>>, vector<1x24x64xf32>
    %97 = vector.shape_cast %96 : vector<1x24x64xf32> to vector<24x64xf32>
    %cst_62 = arith.constant dense<0.000000e+00> : vector<24x128xf32>
    %98 = tpu.matmul %97, %95, %cst_62 {dimension_numbers = #tpu.dot_dimension_numbers<[1], [0], [0], [1], [0, 0, 1, 1], [], []>} : vector<24x64xf32>, vector<64x128xf32>, vector<24x128xf32> -> vector<24x128xf32>
    %c0_63 = arith.constant 0 : index
    %c0_64 = arith.constant 0 : index
    %c0_65 = arith.constant 0 : index
    %99 = vector.load %arg21[%c0_63, %c0_64, %c0_65] : memref<3x24x1xf32, #tpu.memory_space<vmem>>, vector<1x24x1xf32>
    %100 = vector.shape_cast %99 : vector<1x24x1xf32> to vector<24x1xf32>
    %101 = vector.broadcast %100 : vector<24x1xf32> to vector<24x128xf32>
    %102 = arith.addf %98, %101 : vector<24x128xf32>
    %103 = vector.extract_strided_slice %102 {offsets = [0, 0], sizes = [8, 128], strides = [1, 1]} : vector<24x128xf32> to vector<8x128xf32>
    %104 = vector.extract_strided_slice %102 {offsets = [8, 0], sizes = [8, 128], strides = [1, 1]} : vector<24x128xf32> to vector<8x128xf32>
    %105 = math.exp %104 : vector<8x128xf32>
    %106 = arith.mulf %1, %105 : vector<8x128xf32>
    %107 = arith.addf %106, %103 : vector<8x128xf32>
    %108 = vector.extract_strided_slice %102 {offsets = [16, 0], sizes = [1, 128], strides = [1, 1]} : vector<24x128xf32> to vector<1x128xf32>
    %109 = arith.addf %73, %108 : vector<1x128xf32>
    %c1 = arith.constant 1 : index
    %c0_66 = arith.constant 0 : index
    %c0_67 = arith.constant 0 : index
    %110 = vector.load %arg14[%c1, %c0_66, %c0_67] : memref<3x64x8xf32, #tpu.memory_space<vmem>>, vector<1x64x8xf32>
    %111 = vector.shape_cast %110 : vector<1x64x8xf32> to vector<64x8xf32>
    %cst_68 = arith.constant dense<0.000000e+00> : vector<64x128xf32>
    %112 = tpu.matmul %111, %107, %cst_68 {dimension_numbers = #tpu.dot_dimension_numbers<[1], [0], [0], [1], [0, 0, 1, 1], [], []>} : vector<64x8xf32>, vector<8x128xf32>, vector<64x128xf32> -> vector<64x128xf32>
    %113 = vector.extract_strided_slice %72 {offsets = [64, 0], sizes = [64, 128], strides = [1, 1]} : vector<192x128xf32> to vector<64x128xf32>
    %114 = arith.addf %112, %113 : vector<64x128xf32>
    %cst_69 = arith.constant 5.000000e-01 : f32
    %115 = vector.broadcast %cst_69 : f32 to vector<64x128xf32>
    %116 = arith.mulf %115, %114 : vector<64x128xf32>
    %117 = math.tanh %116 : vector<64x128xf32>
    %118 = arith.mulf %116, %117 : vector<64x128xf32>
    %119 = arith.addf %116, %118 : vector<64x128xf32>
    %c1_70 = arith.constant 1 : index
    %c0_71 = arith.constant 0 : index
    %c0_72 = arith.constant 0 : index
    %120 = vector.load %arg18[%c1_70, %c0_71, %c0_72] : memref<3x64x64xf32, #tpu.memory_space<vmem>>, vector<1x64x64xf32>
    %121 = vector.shape_cast %120 : vector<1x64x64xf32> to vector<64x64xf32>
    %cst_73 = arith.constant dense<0.000000e+00> : vector<64x128xf32>
    %122 = tpu.matmul %121, %119, %cst_73 {dimension_numbers = #tpu.dot_dimension_numbers<[1], [0], [0], [1], [0, 0, 1, 1], [], []>} : vector<64x64xf32>, vector<64x128xf32>, vector<64x128xf32> -> vector<64x128xf32>
    %c1_74 = arith.constant 1 : index
    %c0_75 = arith.constant 0 : index
    %c0_76 = arith.constant 0 : index
    %123 = vector.load %arg19[%c1_74, %c0_75, %c0_76] : memref<3x64x1xf32, #tpu.memory_space<vmem>>, vector<1x64x1xf32>
    %124 = vector.shape_cast %123 : vector<1x64x1xf32> to vector<64x1xf32>
    %125 = vector.broadcast %124 : vector<64x1xf32> to vector<64x128xf32>
    %126 = arith.addf %122, %125 : vector<64x128xf32>
    %cst_77 = arith.constant 5.000000e-01 : f32
    %127 = vector.broadcast %cst_77 : f32 to vector<64x128xf32>
    %128 = arith.mulf %127, %126 : vector<64x128xf32>
    %129 = math.tanh %128 : vector<64x128xf32>
    %130 = arith.mulf %128, %129 : vector<64x128xf32>
    %131 = arith.addf %128, %130 : vector<64x128xf32>
    %c1_78 = arith.constant 1 : index
    %c0_79 = arith.constant 0 : index
    %c0_80 = arith.constant 0 : index
    %132 = vector.load %arg20[%c1_78, %c0_79, %c0_80] : memref<3x24x64xf32, #tpu.memory_space<vmem>>, vector<1x24x64xf32>
    %133 = vector.shape_cast %132 : vector<1x24x64xf32> to vector<24x64xf32>
    %cst_81 = arith.constant dense<0.000000e+00> : vector<24x128xf32>
    %134 = tpu.matmul %133, %131, %cst_81 {dimension_numbers = #tpu.dot_dimension_numbers<[1], [0], [0], [1], [0, 0, 1, 1], [], []>} : vector<24x64xf32>, vector<64x128xf32>, vector<24x128xf32> -> vector<24x128xf32>
    %c1_82 = arith.constant 1 : index
    %c0_83 = arith.constant 0 : index
    %c0_84 = arith.constant 0 : index
    %135 = vector.load %arg21[%c1_82, %c0_83, %c0_84] : memref<3x24x1xf32, #tpu.memory_space<vmem>>, vector<1x24x1xf32>
    %136 = vector.shape_cast %135 : vector<1x24x1xf32> to vector<24x1xf32>
    %137 = vector.broadcast %136 : vector<24x1xf32> to vector<24x128xf32>
    %138 = arith.addf %134, %137 : vector<24x128xf32>
    %139 = vector.extract_strided_slice %138 {offsets = [0, 0], sizes = [8, 128], strides = [1, 1]} : vector<24x128xf32> to vector<8x128xf32>
    %140 = vector.extract_strided_slice %138 {offsets = [8, 0], sizes = [8, 128], strides = [1, 1]} : vector<24x128xf32> to vector<8x128xf32>
    %141 = math.exp %140 : vector<8x128xf32>
    %142 = arith.mulf %107, %141 : vector<8x128xf32>
    %143 = arith.addf %142, %139 : vector<8x128xf32>
    %144 = vector.extract_strided_slice %138 {offsets = [16, 0], sizes = [1, 128], strides = [1, 1]} : vector<24x128xf32> to vector<1x128xf32>
    %145 = arith.addf %109, %144 : vector<1x128xf32>
    %c2 = arith.constant 2 : index
    %c0_85 = arith.constant 0 : index
    %c0_86 = arith.constant 0 : index
    %146 = vector.load %arg14[%c2, %c0_85, %c0_86] : memref<3x64x8xf32, #tpu.memory_space<vmem>>, vector<1x64x8xf32>
    %147 = vector.shape_cast %146 : vector<1x64x8xf32> to vector<64x8xf32>
    %cst_87 = arith.constant dense<0.000000e+00> : vector<64x128xf32>
    %148 = tpu.matmul %147, %143, %cst_87 {dimension_numbers = #tpu.dot_dimension_numbers<[1], [0], [0], [1], [0, 0, 1, 1], [], []>} : vector<64x8xf32>, vector<8x128xf32>, vector<64x128xf32> -> vector<64x128xf32>
    %149 = vector.extract_strided_slice %72 {offsets = [128, 0], sizes = [64, 128], strides = [1, 1]} : vector<192x128xf32> to vector<64x128xf32>
    %150 = arith.addf %148, %149 : vector<64x128xf32>
    %cst_88 = arith.constant 5.000000e-01 : f32
    %151 = vector.broadcast %cst_88 : f32 to vector<64x128xf32>
    %152 = arith.mulf %151, %150 : vector<64x128xf32>
    %153 = math.tanh %152 : vector<64x128xf32>
    %154 = arith.mulf %152, %153 : vector<64x128xf32>
    %155 = arith.addf %152, %154 : vector<64x128xf32>
    %c2_89 = arith.constant 2 : index
    %c0_90 = arith.constant 0 : index
    %c0_91 = arith.constant 0 : index
    %156 = vector.load %arg18[%c2_89, %c0_90, %c0_91] : memref<3x64x64xf32, #tpu.memory_space<vmem>>, vector<1x64x64xf32>
    %157 = vector.shape_cast %156 : vector<1x64x64xf32> to vector<64x64xf32>
    %cst_92 = arith.constant dense<0.000000e+00> : vector<64x128xf32>
    %158 = tpu.matmul %157, %155, %cst_92 {dimension_numbers = #tpu.dot_dimension_numbers<[1], [0], [0], [1], [0, 0, 1, 1], [], []>} : vector<64x64xf32>, vector<64x128xf32>, vector<64x128xf32> -> vector<64x128xf32>
    %c2_93 = arith.constant 2 : index
    %c0_94 = arith.constant 0 : index
    %c0_95 = arith.constant 0 : index
    %159 = vector.load %arg19[%c2_93, %c0_94, %c0_95] : memref<3x64x1xf32, #tpu.memory_space<vmem>>, vector<1x64x1xf32>
    %160 = vector.shape_cast %159 : vector<1x64x1xf32> to vector<64x1xf32>
    %161 = vector.broadcast %160 : vector<64x1xf32> to vector<64x128xf32>
    %162 = arith.addf %158, %161 : vector<64x128xf32>
    %cst_96 = arith.constant 5.000000e-01 : f32
    %163 = vector.broadcast %cst_96 : f32 to vector<64x128xf32>
    %164 = arith.mulf %163, %162 : vector<64x128xf32>
    %165 = math.tanh %164 : vector<64x128xf32>
    %166 = arith.mulf %164, %165 : vector<64x128xf32>
    %167 = arith.addf %164, %166 : vector<64x128xf32>
    %c2_97 = arith.constant 2 : index
    %c0_98 = arith.constant 0 : index
    %c0_99 = arith.constant 0 : index
    %168 = vector.load %arg20[%c2_97, %c0_98, %c0_99] : memref<3x24x64xf32, #tpu.memory_space<vmem>>, vector<1x24x64xf32>
    %169 = vector.shape_cast %168 : vector<1x24x64xf32> to vector<24x64xf32>
    %cst_100 = arith.constant dense<0.000000e+00> : vector<24x128xf32>
    %170 = tpu.matmul %169, %167, %cst_100 {dimension_numbers = #tpu.dot_dimension_numbers<[1], [0], [0], [1], [0, 0, 1, 1], [], []>} : vector<24x64xf32>, vector<64x128xf32>, vector<24x128xf32> -> vector<24x128xf32>
    %c2_101 = arith.constant 2 : index
    %c0_102 = arith.constant 0 : index
    %c0_103 = arith.constant 0 : index
    %171 = vector.load %arg21[%c2_101, %c0_102, %c0_103] : memref<3x24x1xf32, #tpu.memory_space<vmem>>, vector<1x24x1xf32>
    %172 = vector.shape_cast %171 : vector<1x24x1xf32> to vector<24x1xf32>
    %173 = vector.broadcast %172 : vector<24x1xf32> to vector<24x128xf32>
    %174 = arith.addf %170, %173 : vector<24x128xf32>
    %175 = vector.extract_strided_slice %174 {offsets = [0, 0], sizes = [8, 128], strides = [1, 1]} : vector<24x128xf32> to vector<8x128xf32>
    %176 = vector.extract_strided_slice %174 {offsets = [8, 0], sizes = [8, 128], strides = [1, 1]} : vector<24x128xf32> to vector<8x128xf32>
    %177 = math.exp %176 : vector<8x128xf32>
    %178 = arith.mulf %143, %177 : vector<8x128xf32>
    %179 = arith.addf %178, %175 : vector<8x128xf32>
    %180 = vector.extract_strided_slice %174 {offsets = [16, 0], sizes = [1, 128], strides = [1, 1]} : vector<24x128xf32> to vector<1x128xf32>
    %181 = arith.addf %145, %180 : vector<1x128xf32>
    %cst_104 = arith.constant 1.000000e+00 : f32
    %182 = vector.broadcast %cst_104 : f32 to vector<1x8xf32>
    %183 = arith.mulf %179, %179 : vector<8x128xf32>
    %cst_105 = arith.constant dense<0.000000e+00> : vector<1x128xf32>
    %184 = tpu.matmul %182, %183, %cst_105 {dimension_numbers = #tpu.dot_dimension_numbers<[1], [0], [0], [1], [0, 0, 1, 1], [], []>} : vector<1x8xf32>, vector<8x128xf32>, vector<1x128xf32> -> vector<1x128xf32>
    %cst_106 = arith.constant -5.000000e-01 : f32
    %185 = vector.broadcast %cst_106 : f32 to vector<1x128xf32>
    %186 = arith.mulf %185, %184 : vector<1x128xf32>
    %cst_107 = arith.constant 7.35150814 : f32
    %187 = vector.broadcast %cst_107 : f32 to vector<1x128xf32>
    %188 = arith.subf %186, %187 : vector<1x128xf32>
    %189 = arith.addf %188, %181 : vector<1x128xf32>
    %c0_108 = arith.constant 0 : index
    %c0_109 = arith.constant 0 : index
    %190 = vector.load %arg22[%c0_108, %c0_109] : memref<1x128xf32, #tpu.memory_space<vmem>>, vector<1x128xf32>
    tpu.vector_store %arg22[%c0_108, %c0_109], %189 {strides = array<i32>} : memref<1x128xf32, #tpu.memory_space<vmem>>, vector<1x128xf32>,
    return
  }
  func.func @transform_0(%arg0: i32) -> (i32, i32) {
    %c0_i32 = arith.constant 0 : i32
    %c0_i32_0 = arith.constant 0 : i32
    return %c0_i32, %arg0 : i32, i32
  }
  func.func @transform_1(%arg0: i32) -> (i32, i32) {
    %c0_i32 = arith.constant 0 : i32
    %c0_i32_0 = arith.constant 0 : i32
    %c0_i32_1 = arith.constant 0 : i32
    return %c0_i32, %c0_i32_0 : i32, i32
  }
  func.func @transform_2(%arg0: i32) -> (i32, i32) {
    %c0_i32 = arith.constant 0 : i32
    %c0_i32_0 = arith.constant 0 : i32
    %c0_i32_1 = arith.constant 0 : i32
    return %c0_i32, %c0_i32_0 : i32, i32
  }
  func.func @transform_3(%arg0: i32) -> (i32, i32) {
    %c0_i32 = arith.constant 0 : i32
    %c0_i32_0 = arith.constant 0 : i32
    %c0_i32_1 = arith.constant 0 : i32
    return %c0_i32, %c0_i32_0 : i32, i32
  }
  func.func @transform_4(%arg0: i32) -> (i32, i32) {
    %c0_i32 = arith.constant 0 : i32
    %c0_i32_0 = arith.constant 0 : i32
    %c0_i32_1 = arith.constant 0 : i32
    return %c0_i32, %c0_i32_0 : i32, i32
  }
  func.func @transform_5(%arg0: i32) -> (i32, i32) {
    %c0_i32 = arith.constant 0 : i32
    %c0_i32_0 = arith.constant 0 : i32
    %c0_i32_1 = arith.constant 0 : i32
    return %c0_i32, %c0_i32_0 : i32, i32
  }
  func.func @transform_6(%arg0: i32) -> (i32, i32) {
    %c0_i32 = arith.constant 0 : i32
    %c0_i32_0 = arith.constant 0 : i32
    %c0_i32_1 = arith.constant 0 : i32
    return %c0_i32, %c0_i32_0 : i32, i32
  }
  func.func @transform_7(%arg0: i32) -> (i32, i32) {
    %c0_i32 = arith.constant 0 : i32
    %c0_i32_0 = arith.constant 0 : i32
    %c0_i32_1 = arith.constant 0 : i32
    return %c0_i32, %c0_i32_0 : i32, i32
  }
  func.func @transform_8(%arg0: i32) -> (i32, i32) {
    %c0_i32 = arith.constant 0 : i32
    %c0_i32_0 = arith.constant 0 : i32
    %c0_i32_1 = arith.constant 0 : i32
    return %c0_i32, %c0_i32_0 : i32, i32
  }
  func.func @transform_9(%arg0: i32) -> (i32, i32) {
    %c0_i32 = arith.constant 0 : i32
    %c0_i32_0 = arith.constant 0 : i32
    %c0_i32_1 = arith.constant 0 : i32
    return %c0_i32, %c0_i32_0 : i32, i32
  }
  func.func @transform_10(%arg0: i32) -> (i32, i32) {
    %c0_i32 = arith.constant 0 : i32
    %c0_i32_0 = arith.constant 0 : i32
    %c0_i32_1 = arith.constant 0 : i32
    return %c0_i32, %c0_i32_0 : i32, i32
  }
  func.func @transform_11(%arg0: i32) -> (i32, i32) {
    %c0_i32 = arith.constant 0 : i32
    %c0_i32_0 = arith.constant 0 : i32
    %c0_i32_1 = arith.constant 0 : i32
    return %c0_i32, %c0_i32_0 : i32, i32
  }
  func.func @transform_12(%arg0: i32) -> (i32, i32) {
    %c0_i32 = arith.constant 0 : i32
    %c0_i32_0 = arith.constant 0 : i32
    %c0_i32_1 = arith.constant 0 : i32
    return %c0_i32, %c0_i32_0 : i32, i32
  }
  func.func @transform_13(%arg0: i32) -> (i32, i32, i32) {
    %c0_i32 = arith.constant 0 : i32
    %c0_i32_0 = arith.constant 0 : i32
    %c0_i32_1 = arith.constant 0 : i32
    %c0_i32_2 = arith.constant 0 : i32
    return %c0_i32, %c0_i32_0, %c0_i32_1 : i32, i32, i32
  }
  func.func @transform_14(%arg0: i32) -> (i32, i32) {
    %c0_i32 = arith.constant 0 : i32
    %c0_i32_0 = arith.constant 0 : i32
    %c0_i32_1 = arith.constant 0 : i32
    return %c0_i32, %c0_i32_0 : i32, i32
  }
  func.func @transform_15(%arg0: i32) -> (i32, i32) {
    %c0_i32 = arith.constant 0 : i32
    %c0_i32_0 = arith.constant 0 : i32
    %c0_i32_1 = arith.constant 0 : i32
    return %c0_i32, %c0_i32_0 : i32, i32
  }
  func.func @transform_16(%arg0: i32) -> (i32, i32) {
    %c0_i32 = arith.constant 0 : i32
    %c0_i32_0 = arith.constant 0 : i32
    %c0_i32_1 = arith.constant 0 : i32
    return %c0_i32, %c0_i32_0 : i32, i32
  }
  func.func @transform_17(%arg0: i32) -> (i32, i32, i32) {
    %c0_i32 = arith.constant 0 : i32
    %c0_i32_0 = arith.constant 0 : i32
    %c0_i32_1 = arith.constant 0 : i32
    %c0_i32_2 = arith.constant 0 : i32
    return %c0_i32, %c0_i32_0, %c0_i32_1 : i32, i32, i32
  }
  func.func @transform_18(%arg0: i32) -> (i32, i32, i32) {
    %c0_i32 = arith.constant 0 : i32
    %c0_i32_0 = arith.constant 0 : i32
    %c0_i32_1 = arith.constant 0 : i32
    %c0_i32_2 = arith.constant 0 : i32
    return %c0_i32, %c0_i32_0, %c0_i32_1 : i32, i32, i32
  }
  func.func @transform_19(%arg0: i32) -> (i32, i32, i32) {
    %c0_i32 = arith.constant 0 : i32
    %c0_i32_0 = arith.constant 0 : i32
    %c0_i32_1 = arith.constant 0 : i32
    %c0_i32_2 = arith.constant 0 : i32
    return %c0_i32, %c0_i32_0, %c0_i32_1 : i32, i32, i32
  }
  func.func @transform_20(%arg0: i32) -> (i32, i32, i32) {
    %c0_i32 = arith.constant 0 : i32
    %c0_i32_0 = arith.constant 0 : i32
    %c0_i32_1 = arith.constant 0 : i32
    %c0_i32_2 = arith.constant 0 : i32
    return %c0_i32, %c0_i32_0, %c0_i32_1 : i32, i32, i32
  }
  func.func @transform_21(%arg0: i32) -> (i32, i32) {
    %c0_i32 = arith.constant 0 : i32
    %c0_i32_0 = arith.constant 0 : i32
    return %c0_i32, %arg0 : i32, i32
  }
}

</mosaic_0001>

<llo_original>
// kernel: tpu_custom_call.1
$region0: #{tpu_custom_call.1}
  #allocation0 [shape = 'u32[]', space=smem, size = 0x4, offset = 0x4, fixed_abs, tag = 'smem constant byte address 0x4 - core index']
  #allocation1 [shape = 'u32[72,128]{1,0:T(1,128)}', space=vmem, size = 0x9000, scoped, tag = 'internal scratch']
  %s0 = inlined_call_operand.vmem [shape: f32[17,128], index: 0, kind: input, shape index: {}]
  %s1 = inlined_call_operand.vmem [shape: f32[32,8], index: 1, kind: input, shape index: {}]
  %s2 = inlined_call_operand.vmem [shape: f32[32,1], index: 2, kind: input, shape index: {}]
  %s3 = inlined_call_operand.vmem [shape: f32[32,32], index: 3, kind: input, shape index: {}]
  %s4 = inlined_call_operand.vmem [shape: f32[32,1], index: 4, kind: input, shape index: {}]
  %s5 = inlined_call_operand.vmem [shape: f32[32,32], index: 5, kind: input, shape index: {}]
  %s6 = inlined_call_operand.vmem [shape: f32[32,1], index: 6, kind: input, shape index: {}]
  %s7 = inlined_call_operand.vmem [shape: f32[32,1], index: 7, kind: input, shape index: {}]
  %s8 = inlined_call_operand.vmem [shape: f32[32,1], index: 8, kind: input, shape index: {}]
  %s9 = inlined_call_operand.vmem [shape: f32[32,32], index: 9, kind: input, shape index: {}]
  %s10 = inlined_call_operand.vmem [shape: f32[32,1], index: 10, kind: input, shape index: {}]
  %s11 = inlined_call_operand.vmem [shape: f32[32,32], index: 11, kind: input, shape index: {}]
  %s12 = inlined_call_operand.vmem [shape: f32[32,1], index: 12, kind: input, shape index: {}]
  %s13 = inlined_call_operand.vmem [shape: f32[3,64,8], index: 13, kind: input, shape index: {}]
  %s14 = inlined_call_operand.vmem [shape: f32[192,32], index: 14, kind: input, shape index: {}]
  %s15 = inlined_call_operand.vmem [shape: f32[192,32], index: 15, kind: input, shape index: {}]
  %s16 = inlined_call_operand.vmem [shape: f32[192,1], index: 16, kind: input, shape index: {}]
  %s17 = inlined_call_operand.vmem [shape: f32[3,64,64], index: 17, kind: input, shape index: {}]
  %s18 = inlined_call_operand.vmem [shape: f32[3,64,1], index: 18, kind: input, shape index: {}]
  %s19 = inlined_call_operand.vmem [shape: f32[3,24,64], index: 19, kind: input, shape index: {}]
  %s20 = inlined_call_operand.vmem [shape: f32[3,24,1], index: 20, kind: input, shape index: {}]
  %s21 = inlined_call_operand.hbm [shape: f32[1,128], index: 21, kind: output, shape index: {}]
  %s22 = sld [smem:[#allocation0]]
  $region94: #{tpu_custom_call.1} parent=0
    _
  %s24 = ssub.s32 1, %s22
  %s25 = scalar_select 0, %s24, %s22
  $region1: #{tpu_custom_call.1} parent=0
    #allocation2 [shape = 'u8[512]{0}', space=vmem, size = 0x400, scoped, tag = 'output window, operand 0, single buffered']
    #allocation3 [shape = 's32[1]{0}', space=sflag, size = 0x4, scoped, tag = 'scoped memory for tpu_custom_call.1']
    %26 = vsyncpa [#allocation3], 0
    // Predicated region
    $region2: #{tpu_custom_call.1} parent=1 // pred_check
      _
    $region3: #{tpu_custom_call.1} parent=1 // pred_check_branch
      %28 = sbr.rel (0) target = $region5
    $region4: #{tpu_custom_call.1} parent=1 // pred_region
      _
    $region5: #{tpu_custom_call.1} parent=1 // pred_fallthru
      _
    // Predicated region
    $region6: #{tpu_custom_call.1} parent=1 // pred_check
      _
    $region7: #{tpu_custom_call.1} parent=1 // pred_check_branch
      %30 = sbr.rel (0) target = $region9
    $region8: #{tpu_custom_call.1} parent=1 // pred_region
      _
    $region9: #{tpu_custom_call.1} parent=1 // pred_fallthru
      _
    // Predicated region
    $region10: #{tpu_custom_call.1} parent=1 // pred_check
      _
    $region11: #{tpu_custom_call.1} parent=1 // pred_check_branch
      %32 = sbr.rel (0) target = $region13
    $region12: #{tpu_custom_call.1} parent=1 // pred_region
      _
    $region13: #{tpu_custom_call.1} parent=1 // pred_fallthru
      _
    // Predicated region
    $region14: #{tpu_custom_call.1} parent=1 // pred_check
      _
    $region15: #{tpu_custom_call.1} parent=1 // pred_check_branch
      %34 = sbr.rel (0) target = $region17
    $region16: #{tpu_custom_call.1} parent=1 // pred_region
      _
    $region17: #{tpu_custom_call.1} parent=1 // pred_fallthru
      _
    // Predicated region
    $region18: #{tpu_custom_call.1} parent=1 // pred_check
      _
    $region19: #{tpu_custom_call.1} parent=1 // pred_check_branch
      %36 = sbr.rel (0) target = $region21
    $region20: #{tpu_custom_call.1} parent=1 // pred_region
      _
    $region21: #{tpu_custom_call.1} parent=1 // pred_fallthru
      _
    // Predicated region
    $region22: #{tpu_custom_call.1} parent=1 // pred_check
      _
    $region23: #{tpu_custom_call.1} parent=1 // pred_check_branch
      %38 = sbr.rel (0) target = $region25
    $region24: #{tpu_custom_call.1} parent=1 // pred_region
      _
    $region25: #{tpu_custom_call.1} parent=1 // pred_fallthru
      _
    // Predicated region
    $region26: #{tpu_custom_call.1} parent=1 // pred_check
      _
    $region27: #{tpu_custom_call.1} parent=1 // pred_check_branch
      %40 = sbr.rel (0) target = $region29
    $region28: #{tpu_custom_call.1} parent=1 // pred_region
      _
    $region29: #{tpu_custom_call.1} parent=1 // pred_fallthru
      _
    // Predicated region
    $region30: #{tpu_custom_call.1} parent=1 // pred_check
      _
    $region31: #{tpu_custom_call.1} parent=1 // pred_check_branch
      %42 = sbr.rel (0) target = $region33
    $region32: #{tpu_custom_call.1} parent=1 // pred_region
      _
    $region33: #{tpu_custom_call.1} parent=1 // pred_fallthru
      _
    // Predicated region
    $region34: #{tpu_custom_call.1} parent=1 // pred_check
      _
    $region35: #{tpu_custom_call.1} parent=1 // pred_check_branch
      %44 = sbr.rel (0) target = $region37
    $region36: #{tpu_custom_call.1} parent=1 // pred_region
      _
    $region37: #{tpu_custom_call.1} parent=1 // pred_fallthru
      _
    // Predicated region
    $region38: #{tpu_custom_call.1} parent=1 // pred_check
      _
    $region39: #{tpu_custom_call.1} parent=1 // pred_check_branch
      %46 = sbr.rel (0) target = $region41
    $region40: #{tpu_custom_call.1} parent=1 // pred_region
      _
    $region41: #{tpu_custom_call.1} parent=1 // pred_fallthru
      _
    // Predicated region
    $region42: #{tpu_custom_call.1} parent=1 // pred_check
      _
    $region43: #{tpu_custom_call.1} parent=1 // pred_check_branch
      %48 = sbr.rel (0) target = $region45
    $region44: #{tpu_custom_call.1} parent=1 // pred_region
      _
    $region45: #{tpu_custom_call.1} parent=1 // pred_fallthru
      _
    // Predicated region
    $region46: #{tpu_custom_call.1} parent=1 // pred_check
      _
    $region47: #{tpu_custom_call.1} parent=1 // pred_check_branch
      %50 = sbr.rel (0) target = $region49
    $region48: #{tpu_custom_call.1} parent=1 // pred_region
      _
    $region49: #{tpu_custom_call.1} parent=1 // pred_fallthru
      _
    // Predicated region
    $region50: #{tpu_custom_call.1} parent=1 // pred_check
      _
    $region51: #{tpu_custom_call.1} parent=1 // pred_check_branch
      %52 = sbr.rel (0) target = $region53
    $region52: #{tpu_custom_call.1} parent=1 // pred_region
      _
    $region53: #{tpu_custom_call.1} parent=1 // pred_fallthru
      _
    // Predicated region
    $region54: #{tpu_custom_call.1} parent=1 // pred_check
      _
    $region55: #{tpu_custom_call.1} parent=1 // pred_check_branch
      %54 = sbr.rel (0) target = $region57
    $region56: #{tpu_custom_call.1} parent=1 // pred_region
      _
    $region57: #{tpu_custom_call.1} parent=1 // pred_fallthru
      _
    // Predicated region
    $region58: #{tpu_custom_call.1} parent=1 // pred_check
      _
    $region59: #{tpu_custom_call.1} parent=1 // pred_check_branch
      %56 = sbr.rel (0) target = $region61
    $region60: #{tpu_custom_call.1} parent=1 // pred_region
      _
    $region61: #{tpu_custom_call.1} parent=1 // pred_fallthru
      _
    // Predicated region
    $region62: #{tpu_custom_call.1} parent=1 // pred_check
      _
    $region63: #{tpu_custom_call.1} parent=1 // pred_check_branch
      %58 = sbr.rel (0) target = $region65
    $region64: #{tpu_custom_call.1} parent=1 // pred_region
      _
    $region65: #{tpu_custom_call.1} parent=1 // pred_fallthru
      _
    // Predicated region
    $region66: #{tpu_custom_call.1} parent=1 // pred_check
      _
    $region67: #{tpu_custom_call.1} parent=1 // pred_check_branch
      %60 = sbr.rel (0) target = $region69
    $region68: #{tpu_custom_call.1} parent=1 // pred_region
      _
    $region69: #{tpu_custom_call.1} parent=1 // pred_fallthru
      _
    // Predicated region
    $region70: #{tpu_custom_call.1} parent=1 // pred_check
      _
    $region71: #{tpu_custom_call.1} parent=1 // pred_check_branch
      %62 = sbr.rel (0) target = $region73
    $region72: #{tpu_custom_call.1} parent=1 // pred_region
      _
    $region73: #{tpu_custom_call.1} parent=1 // pred_fallthru
      _
    // Predicated region
    $region74: #{tpu_custom_call.1} parent=1 // pred_check
      _
    $region75: #{tpu_custom_call.1} parent=1 // pred_check_branch
      %64 = sbr.rel (0) target = $region77
    $region76: #{tpu_custom_call.1} parent=1 // pred_region
      _
    $region77: #{tpu_custom_call.1} parent=1 // pred_fallthru
      _
    // Predicated region
    $region78: #{tpu_custom_call.1} parent=1 // pred_check
      _
    $region79: #{tpu_custom_call.1} parent=1 // pred_check_branch
      %66 = sbr.rel (0) target = $region81
    $region80: #{tpu_custom_call.1} parent=1 // pred_region
      _
    $region81: #{tpu_custom_call.1} parent=1 // pred_fallthru
      _
    // Predicated region
    $region82: #{tpu_custom_call.1} parent=1 // pred_check
      _
    $region83: #{tpu_custom_call.1} parent=1 // pred_check_branch
      %68 = sbr.rel (0) target = $region85
    $region84: #{tpu_custom_call.1} parent=1 // pred_region
      _
    $region85: #{tpu_custom_call.1} parent=1 // pred_fallthru
      _
    %v69 = vld [vmem:[%s0] sm:$0xff]
    %v70 = vld [vmem:[%s0 + $0x8] sm:$0xff]
    %v71 = vld [vmem:[%s0 + $0x10] sm:$0x1]
    %v72 = vld [vmem:[%s1] sm:$0xff]
    %v73 = vld [vmem:[%s1 + $0x8] sm:$0xff]
    %v74 = vld [vmem:[%s1 + $0x10] sm:$0xff]
    %v75 = vld [vmem:[%s1 + $0x18] sm:$0xff]
    %v76 = vld [vmem:[%s2] sm:$0xff]
    %v77 = vld [vmem:[%s2 + $0x8] sm:$0xff]
    %v78 = vld [vmem:[%s2 + $0x10] sm:$0xff]
    %v79 = vld [vmem:[%s2 + $0x18] sm:$0xff]
    %81 = vset.pattern.permute.xlu0 0
    %82 = vperm.xlu0 %81, %v76
    %v83 = vpop.permute.xlu0 %82
    %86 = vset.pattern.permute.xlu0 0
    %87 = vperm.xlu0 %86, %v77
    %v88 = vpop.permute.xlu0 %87
    %91 = vset.pattern.permute.xlu0 0
    %92 = vperm.xlu0 %91, %v78
    %v93 = vpop.permute.xlu0 %92
    %96 = vset.pattern.permute.xlu0 0
    %97 = vperm.xlu0 %96, %v79
    %v98 = vpop.permute.xlu0 %97
    %vm100 = vcmask 64512
    %v102 = vsel %vm100, %v72, 0
    %v105 = vsel %vm100, %v73, 0
    %v108 = vsel %vm100, %v74, 0
    %v111 = vsel %vm100, %v75, 0
    %113 = vmatpush.msra.mxu0 0.0
    %114 = vmatpush.msra.mxu0 0.0
    %115 = vmatpush.msra.mxu0 0.0
    %116 = vmatpush.msra.mxu0 0.0
    %117 = vmatpush.msra.mxu0 0.0
    %118 = vmatpush.msra.mxu0 0.0
    %119 = vmatpush.msra.mxu0 0.0
    %120 = vmatpush.msra.mxu0 0.0
    %121 = vmatpush.msra.mxu0 0.0
    %122 = vmatpush.msra.mxu0 0.0
    %123 = vmatpush.msra.mxu0 0.0
    %124 = vmatpush.msra.mxu0 0.0
    %125 = vmatpush.msra.mxu0 0.0
    %126 = vmatpush.msra.mxu0 0.0
    %127 = vmatpush.msra.mxu0 0.0
    %128 = vmatpush.msra.mxu0 %v69
    %129 = vmatmul.f32.gmra.mxu0 %v102
    %v130 = vpop.f32.mrf.mxu0
    %v131 = vadd.f32 %v83, %v130
    %132 = vmatmul.f32.gmra.mxu0 %v105
    %v133 = vpop.f32.mrf.mxu0
    %v134 = vadd.f32 %v88, %v133
    %135 = vmatmul.f32.gmra.mxu0 %v108
    %v136 = vpop.f32.mrf.mxu0
    %v137 = vadd.f32 %v93, %v136
    %138 = vmatmul.f32.gmra.mxu0 %v111
    %v139 = vpop.f32.mrf.mxu0
    %v140 = vadd.f32 %v98, %v139
    %141 = vdwg.mxu0
    %v142 = vmul.f32 %v131, 0.5
    %v143 = vmul.f32 %v134, 0.5
    %v144 = vmul.f32 %v137, 0.5
    %v145 = vmul.f32 %v140, 0.5
    %v146 = vtanh.pop %v142
    %v147 = vtanh.pop %v143
    %v148 = vtanh.pop %v144
    %v149 = vtanh.pop %v145
    %v150 = vmul.f32 %v142, %v146
    %v151 = vmul.f32 %v143, %v147
    %v152 = vmul.f32 %v144, %v148
    %v153 = vmul.f32 %v145, %v149
    %v154 = vadd.f32 %v142, %v150
    %v155 = vadd.f32 %v143, %v151
    %v156 = vadd.f32 %v144, %v152
    %v157 = vadd.f32 %v145, %v153
    %v158 = vld [vmem:[%s3] sm:$0xff]
    %v159 = vld [vmem:[%s3 + $0x8] sm:$0xff]
    %v160 = vld [vmem:[%s3 + $0x10] sm:$0xff]
    %v161 = vld [vmem:[%s3 + $0x18] sm:$0xff]
    %v162 = vld [vmem:[%s4] sm:$0xff]
    %v163 = vld [vmem:[%s4 + $0x8] sm:$0xff]
    %v164 = vld [vmem:[%s4 + $0x10] sm:$0xff]
    %v165 = vld [vmem:[%s4 + $0x18] sm:$0xff]
    %167 = vset.pattern.permute.xlu0 0
    %168 = vperm.xlu0 %167, %v162
    %v169 = vpop.permute.xlu0 %168
    %172 = vset.pattern.permute.xlu0 0
    %173 = vperm.xlu0 %172, %v163
    %v174 = vpop.permute.xlu0 %173
    %177 = vset.pattern.permute.xlu0 0
    %178 = vperm.xlu0 %177, %v164
    %v179 = vpop.permute.xlu0 %178
    %182 = vset.pattern.permute.xlu0 0
    %183 = vperm.xlu0 %182, %v165
    %v184 = vpop.permute.xlu0 %183
    %vm186 = vcmask 261120
    %v188 = vsel %vm186, %v158, 0
    %v191 = vsel %vm186, %v159, 0
    %v194 = vsel %vm186, %v160, 0
    %v197 = vsel %vm186, %v161, 0
    %199 = vmatpush.msra.mxu0 0.0
    %200 = vmatpush.msra.mxu0 0.0
    %201 = vmatpush.msra.mxu0 0.0
    %202 = vmatpush.msra.mxu0 0.0
    %203 = vmatpush.msra.mxu0 0.0
    %204 = vmatpush.msra.mxu0 0.0
    %205 = vmatpush.msra.mxu0 0.0
    %206 = vmatpush.msra.mxu0 0.0
    %207 = vmatpush.msra.mxu0 0.0
    %208 = vmatpush.msra.mxu0 0.0
    %209 = vmatpush.msra.mxu0 0.0
    %210 = vmatpush.msra.mxu0 0.0
    %211 = vmatpush.msra.mxu0 %v157
    %212 = vmatpush.msra.mxu0 %v156
    %213 = vmatpush.msra.mxu0 %v155
    %214 = vmatpush.msra.mxu0 %v154
    %215 = vmatmul.f32.gmra.mxu0 %v188
    %v216 = vpop.f32.mrf.mxu0
    %v217 = vadd.f32 %v169, %v216
    %218 = vmatmul.f32.gmra.mxu0 %v191
    %v219 = vpop.f32.mrf.mxu0
    %v220 = vadd.f32 %v174, %v219
    %221 = vmatmul.f32.gmra.mxu0 %v194
    %v222 = vpop.f32.mrf.mxu0
    %v223 = vadd.f32 %v179, %v222
    %224 = vmatmul.f32.gmra.mxu0 %v197
    %v225 = vpop.f32.mrf.mxu0
    %v226 = vadd.f32 %v184, %v225
    %227 = vdwg.mxu0
    %v228 = vmul.f32 %v217, 0.5
    %v229 = vmul.f32 %v220, 0.5
    %v230 = vmul.f32 %v223, 0.5
    %v231 = vmul.f32 %v226, 0.5
    %v232 = vtanh.pop %v228
    %v233 = vtanh.pop %v229
    %v234 = vtanh.pop %v230
    %v235 = vtanh.pop %v231
    %v236 = vmul.f32 %v228, %v232
    %v237 = vmul.f32 %v229, %v233
    %v238 = vmul.f32 %v230, %v234
    %v239 = vmul.f32 %v231, %v235
    %v240 = vadd.f32 %v228, %v236
    %v241 = vadd.f32 %v229, %v237
    %v242 = vadd.f32 %v230, %v238
    %v243 = vadd.f32 %v231, %v239
    %v244 = vld [vmem:[%s5] sm:$0xff]
    %v245 = vld [vmem:[%s5 + $0x8] sm:$0xff]
    %v246 = vld [vmem:[%s5 + $0x10] sm:$0xff]
    %v247 = vld [vmem:[%s5 + $0x18] sm:$0xff]
    %v248 = vld [vmem:[%s6] sm:$0xff]
    %v249 = vld [vmem:[%s6 + $0x8] sm:$0xff]
    %v250 = vld [vmem:[%s6 + $0x10] sm:$0xff]
    %v251 = vld [vmem:[%s6 + $0x18] sm:$0xff]
    %253 = vset.pattern.permute.xlu0 0
    %254 = vperm.xlu0 %253, %v248
    %v255 = vpop.permute.xlu0 %254
    %258 = vset.pattern.permute.xlu0 0
    %259 = vperm.xlu0 %258, %v249
    %v260 = vpop.permute.xlu0 %259
    %263 = vset.pattern.permute.xlu0 0
    %264 = vperm.xlu0 %263, %v250
    %v265 = vpop.permute.xlu0 %264
    %268 = vset.pattern.permute.xlu0 0
    %269 = vperm.xlu0 %268, %v251
    %v270 = vpop.permute.xlu0 %269
    %v273 = vsel %vm186, %v244, 0
    %v276 = vsel %vm186, %v245, 0
    %v279 = vsel %vm186, %v246, 0
    %v282 = vsel %vm186, %v247, 0
    %284 = vmatpush.msra.mxu0 0.0
    %285 = vmatpush.msra.mxu0 0.0
    %286 = vmatpush.msra.mxu0 0.0
    %287 = vmatpush.msra.mxu0 0.0
    %288 = vmatpush.msra.mxu0 0.0
    %289 = vmatpush.msra.mxu0 0.0
    %290 = vmatpush.msra.mxu0 0.0
    %291 = vmatpush.msra.mxu0 0.0
    %292 = vmatpush.msra.mxu0 0.0
    %293 = vmatpush.msra.mxu0 0.0
    %294 = vmatpush.msra.mxu0 0.0
    %295 = vmatpush.msra.mxu0 0.0
    %296 = vmatpush.msra.mxu0 %v243
    %297 = vmatpush.msra.mxu0 %v242
    %298 = vmatpush.msra.mxu0 %v241
    %299 = vmatpush.msra.mxu0 %v240
    %300 = vmatmul.f32.gmra.mxu0 %v273
    %v301 = vpop.f32.mrf.mxu0
    %v302 = vadd.f32 %v255, %v301
    %303 = vmatmul.f32.gmra.mxu0 %v276
    %v304 = vpop.f32.mrf.mxu0
    %v305 = vadd.f32 %v260, %v304
    %306 = vmatmul.f32.gmra.mxu0 %v279
    %v307 = vpop.f32.mrf.mxu0
    %v308 = vadd.f32 %v265, %v307
    %309 = vmatmul.f32.gmra.mxu0 %v282
    %v310 = vpop.f32.mrf.mxu0
    %v311 = vadd.f32 %v270, %v310
    %312 = vdwg.mxu0
    %v313 = vmul.f32 %v302, 0.5
    %v314 = vmul.f32 %v305, 0.5
    %v315 = vmul.f32 %v308, 0.5
    %v316 = vmul.f32 %v311, 0.5
    %v317 = vtanh.pop %v313
    %v318 = vtanh.pop %v314
    %v319 = vtanh.pop %v315
    %v320 = vtanh.pop %v316
    %v321 = vmul.f32 %v313, %v317
    %v322 = vmul.f32 %v314, %v318
    %v323 = vmul.f32 %v315, %v319
    %v324 = vmul.f32 %v316, %v320
    %v325 = vadd.f32 %v313, %v321
    %v326 = vadd.f32 %v314, %v322
    %v327 = vadd.f32 %v315, %v323
    %v328 = vadd.f32 %v316, %v324
    %v329 = vld [vmem:[%s7] sm:$0xff]
    %v330 = vld [vmem:[%s7 + $0x8] sm:$0xff]
    %v331 = vld [vmem:[%s7 + $0x10] sm:$0xff]
    %v332 = vld [vmem:[%s7 + $0x18] sm:$0xff]
    %334 = vset.pattern.permute.xlu0 0
    %335 = vperm.xlu0 %334, %v329
    %v336 = vpop.permute.xlu0 %335
    %339 = vset.pattern.permute.xlu0 0
    %340 = vperm.xlu0 %339, %v330
    %v341 = vpop.permute.xlu0 %340
    %344 = vset.pattern.permute.xlu0 0
    %345 = vperm.xlu0 %344, %v331
    %v346 = vpop.permute.xlu0 %345
    %349 = vset.pattern.permute.xlu0 0
    %350 = vperm.xlu0 %349, %v332
    %v351 = vpop.permute.xlu0 %350
    %v353 = vperm.slane %v71, 0
    %v354 = vmul.f32 %v336, %v353
    %v355 = vmul.f32 %v341, %v353
    %v356 = vmul.f32 %v346, %v353
    %v357 = vmul.f32 %v351, %v353
    %v358 = vld [vmem:[%s8] sm:$0xff]
    %v359 = vld [vmem:[%s8 + $0x8] sm:$0xff]
    %v360 = vld [vmem:[%s8 + $0x10] sm:$0xff]
    %v361 = vld [vmem:[%s8 + $0x18] sm:$0xff]
    %363 = vset.pattern.permute.xlu0 0
    %364 = vperm.xlu0 %363, %v358
    %v365 = vpop.permute.xlu0 %364
    %368 = vset.pattern.permute.xlu0 0
    %369 = vperm.xlu0 %368, %v359
    %v370 = vpop.permute.xlu0 %369
    %373 = vset.pattern.permute.xlu0 0
    %374 = vperm.xlu0 %373, %v360
    %v375 = vpop.permute.xlu0 %374
    %378 = vset.pattern.permute.xlu0 0
    %379 = vperm.xlu0 %378, %v361
    %v380 = vpop.permute.xlu0 %379
    %v382 = vadd.f32 %v354, %v365
    %v383 = vadd.f32 %v355, %v370
    %v384 = vadd.f32 %v356, %v375
    %v385 = vadd.f32 %v357, %v380
    %v386 = vmul.f32 %v382, 0.5
    %v387 = vmul.f32 %v383, 0.5
    %v388 = vmul.f32 %v384, 0.5
    %v389 = vmul.f32 %v385, 0.5
    %v390 = vtanh.pop %v386
    %v391 = vtanh.pop %v387
    %v392 = vtanh.pop %v388
    %v393 = vtanh.pop %v389
    %v394 = vmul.f32 %v386, %v390
    %v395 = vmul.f32 %v387, %v391
    %v396 = vmul.f32 %v388, %v392
    %v397 = vmul.f32 %v389, %v393
    %v398 = vadd.f32 %v386, %v394
    %v399 = vadd.f32 %v387, %v395
    %v400 = vadd.f32 %v388, %v396
    %v401 = vadd.f32 %v389, %v397
    %v402 = vld [vmem:[%s9] sm:$0xff]
    %v403 = vld [vmem:[%s9 + $0x8] sm:$0xff]
    %v404 = vld [vmem:[%s9 + $0x10] sm:$0xff]
    %v405 = vld [vmem:[%s9 + $0x18] sm:$0xff]
    %v406 = vld [vmem:[%s10] sm:$0xff]
    %v407 = vld [vmem:[%s10 + $0x8] sm:$0xff]
    %v408 = vld [vmem:[%s10 + $0x10] sm:$0xff]
    %v409 = vld [vmem:[%s10 + $0x18] sm:$0xff]
    %411 = vset.pattern.permute.xlu0 0
    %412 = vperm.xlu0 %411, %v406
    %v413 = vpop.permute.xlu0 %412
    %416 = vset.pattern.permute.xlu0 0
    %417 = vperm.xlu0 %416, %v407
    %v418 = vpop.permute.xlu0 %417
    %421 = vset.pattern.permute.xlu0 0
    %422 = vperm.xlu0 %421, %v408
    %v423 = vpop.permute.xlu0 %422
    %426 = vset.pattern.permute.xlu0 0
    %427 = vperm.xlu0 %426, %v409
    %v428 = vpop.permute.xlu0 %427
    %v431 = vsel %vm186, %v402, 0
    %v434 = vsel %vm186, %v403, 0
    %v437 = vsel %vm186, %v404, 0
    %v440 = vsel %vm186, %v405, 0
    %442 = vmatpush.msra.mxu0 0.0
    %443 = vmatpush.msra.mxu0 0.0
    %444 = vmatpush.msra.mxu0 0.0
    %445 = vmatpush.msra.mxu0 0.0
    %446 = vmatpush.msra.mxu0 0.0
    %447 = vmatpush.msra.mxu0 0.0
    %448 = vmatpush.msra.mxu0 0.0
    %449 = vmatpush.msra.mxu0 0.0
    %450 = vmatpush.msra.mxu0 0.0
    %451 = vmatpush.msra.mxu0 0.0
    %452 = vmatpush.msra.mxu0 0.0
    %453 = vmatpush.msra.mxu0 0.0
    %454 = vmatpush.msra.mxu0 %v401
    %455 = vmatpush.msra.mxu0 %v400
    %456 = vmatpush.msra.mxu0 %v399
    %457 = vmatpush.msra.mxu0 %v398
    %458 = vmatmul.f32.gmra.mxu0 %v431
    %v459 = vpop.f32.mrf.mxu0
    %v460 = vadd.f32 %v413, %v459
    %461 = vmatmul.f32.gmra.mxu0 %v434
    %v462 = vpop.f32.mrf.mxu0
    %v463 = vadd.f32 %v418, %v462
    %464 = vmatmul.f32.gmra.mxu0 %v437
    %v465 = vpop.f32.mrf.mxu0
    %v466 = vadd.f32 %v423, %v465
    %467 = vmatmul.f32.gmra.mxu0 %v440
    %v468 = vpop.f32.mrf.mxu0
    %v469 = vadd.f32 %v428, %v468
    %470 = vdwg.mxu0
    %v471 = vmul.f32 %v460, 0.5
    %v472 = vmul.f32 %v463, 0.5
    %v473 = vmul.f32 %v466, 0.5
    %v474 = vmul.f32 %v469, 0.5
    %v475 = vtanh.pop %v471
    %v476 = vtanh.pop %v472
    %v477 = vtanh.pop %v473
    %v478 = vtanh.pop %v474
    %v479 = vmul.f32 %v471, %v475
    %v480 = vmul.f32 %v472, %v476
    %v481 = vmul.f32 %v473, %v477
    %v482 = vmul.f32 %v474, %v478
    %v483 = vadd.f32 %v471, %v479
    %v484 = vadd.f32 %v472, %v480
    %v485 = vadd.f32 %v473, %v481
    %v486 = vadd.f32 %v474, %v482
    %v487 = vld [vmem:[%s11] sm:$0xff]
    %v488 = vld [vmem:[%s11 + $0x8] sm:$0xff]
    %v489 = vld [vmem:[%s11 + $0x10] sm:$0xff]
    %v490 = vld [vmem:[%s11 + $0x18] sm:$0xff]
    %v491 = vld [vmem:[%s12] sm:$0xff]
    %v492 = vld [vmem:[%s12 + $0x8] sm:$0xff]
    %v493 = vld [vmem:[%s12 + $0x10] sm:$0xff]
    %v494 = vld [vmem:[%s12 + $0x18] sm:$0xff]
    %496 = vset.pattern.permute.xlu0 0
    %497 = vperm.xlu0 %496, %v491
    %v498 = vpop.permute.xlu0 %497
    %501 = vset.pattern.permute.xlu0 0
    %502 = vperm.xlu0 %501, %v492
    %v503 = vpop.permute.xlu0 %502
    %506 = vset.pattern.permute.xlu0 0
    %507 = vperm.xlu0 %506, %v493
    %v508 = vpop.permute.xlu0 %507
    %511 = vset.pattern.permute.xlu0 0
    %512 = vperm.xlu0 %511, %v494
    %v513 = vpop.permute.xlu0 %512
    %v516 = vsel %vm186, %v487, 0
    %v519 = vsel %vm186, %v488, 0
    %v522 = vsel %vm186, %v489, 0
    %v525 = vsel %vm186, %v490, 0
    %527 = vmatpush.msra.mxu0 0.0
    %528 = vmatpush.msra.mxu0 0.0
    %529 = vmatpush.msra.mxu0 0.0
    %530 = vmatpush.msra.mxu0 0.0
    %531 = vmatpush.msra.mxu0 0.0
    %532 = vmatpush.msra.mxu0 0.0
    %533 = vmatpush.msra.mxu0 0.0
    %534 = vmatpush.msra.mxu0 0.0
    %535 = vmatpush.msra.mxu0 0.0
    %536 = vmatpush.msra.mxu0 0.0
    %537 = vmatpush.msra.mxu0 0.0
    %538 = vmatpush.msra.mxu0 0.0
    %539 = vmatpush.msra.mxu0 %v486
    %540 = vmatpush.msra.mxu0 %v485
    %541 = vmatpush.msra.mxu0 %v484
    %542 = vmatpush.msra.mxu0 %v483
    %543 = vmatmul.f32.gmra.mxu0 %v516
    %v544 = vpop.f32.mrf.mxu0
    %v545 = vadd.f32 %v498, %v544
    %546 = vmatmul.f32.gmra.mxu0 %v519
    %v547 = vpop.f32.mrf.mxu0
    %v548 = vadd.f32 %v503, %v547
    %549 = vmatmul.f32.gmra.mxu0 %v522
    %v550 = vpop.f32.mrf.mxu0
    %v551 = vadd.f32 %v508, %v550
    %552 = vmatmul.f32.gmra.mxu0 %v525
    %v553 = vpop.f32.mrf.mxu0
    %v554 = vadd.f32 %v513, %v553
    %555 = vdwg.mxu0
    %v556 = vmul.f32 %v545, 0.5
    %v557 = vmul.f32 %v548, 0.5
    %v558 = vmul.f32 %v551, 0.5
    %v559 = vmul.f32 %v554, 0.5
    %v560 = vtanh.pop %v556
    %v561 = vtanh.pop %v557
    %v562 = vtanh.pop %v558
    %v563 = vtanh.pop %v559
    %v564 = vmul.f32 %v556, %v560
    %v565 = vmul.f32 %v557, %v561
    %v566 = vmul.f32 %v558, %v562
    %v567 = vmul.f32 %v559, %v563
    %v568 = vadd.f32 %v556, %v564
    %v569 = vadd.f32 %v557, %v565
    %v570 = vadd.f32 %v558, %v566
    %v571 = vadd.f32 %v559, %v567
    %v572 = vld [vmem:[%s14] sm:$0xff]
    %v573 = vld [vmem:[%s14 + $0x8] sm:$0xff]
    %v574 = vld [vmem:[%s14 + $0x10] sm:$0xff]
    %v575 = vld [vmem:[%s14 + $0x18] sm:$0xff]
    %v576 = vld [vmem:[%s14 + $0x20] sm:$0xff]
    %v577 = vld [vmem:[%s14 + $0x28] sm:$0xff]
    %v578 = vld [vmem:[%s14 + $0x30] sm:$0xff]
    %v579 = vld [vmem:[%s14 + $0x38] sm:$0xff]
    %v580 = vld [vmem:[%s14 + $0x40] sm:$0xff]
    %v581 = vld [vmem:[%s14 + $0x48] sm:$0xff]
    %v582 = vld [vmem:[%s14 + $0x50] sm:$0xff]
    %v583 = vld [vmem:[%s14 + $0x58] sm:$0xff]
    %v584 = vld [vmem:[%s14 + $0x60] sm:$0xff]
    %v585 = vld [vmem:[%s14 + $0x68] sm:$0xff]
    %v586 = vld [vmem:[%s14 + $0x70] sm:$0xff]
    %v587 = vld [vmem:[%s14 + $0x78] sm:$0xff]
    %v588 = vld [vmem:[%s14 + $0x80] sm:$0xff]
    %v589 = vld [vmem:[%s14 + $0x88] sm:$0xff]
    %v590 = vld [vmem:[%s14 + $0x90] sm:$0xff]
    %v591 = vld [vmem:[%s14 + $0x98] sm:$0xff]
    %v592 = vld [vmem:[%s14 + $0xa0] sm:$0xff]
    %v593 = vld [vmem:[%s14 + $0xa8] sm:$0xff]
    %v594 = vld [vmem:[%s14 + $0xb0] sm:$0xff]
    %v595 = vld [vmem:[%s14 + $0xb8] sm:$0xff]
    %v596 = vld [vmem:[%s15] sm:$0xff]
    %v597 = vld [vmem:[%s15 + $0x8] sm:$0xff]
    %v598 = vld [vmem:[%s15 + $0x10] sm:$0xff]
    %v599 = vld [vmem:[%s15 + $0x18] sm:$0xff]
    %v600 = vld [vmem:[%s15 + $0x20] sm:$0xff]
    %v601 = vld [vmem:[%s15 + $0x28] sm:$0xff]
    %v602 = vld [vmem:[%s15 + $0x30] sm:$0xff]
    %v603 = vld [vmem:[%s15 + $0x38] sm:$0xff]
    %v604 = vld [vmem:[%s15 + $0x40] sm:$0xff]
    %v605 = vld [vmem:[%s15 + $0x48] sm:$0xff]
    %v606 = vld [vmem:[%s15 + $0x50] sm:$0xff]
    %v607 = vld [vmem:[%s15 + $0x58] sm:$0xff]
    %v608 = vld [vmem:[%s15 + $0x60] sm:$0xff]
    %v609 = vld [vmem:[%s15 + $0x68] sm:$0xff]
    %v610 = vld [vmem:[%s15 + $0x70] sm:$0xff]
    %v611 = vld [vmem:[%s15 + $0x78] sm:$0xff]
    %v612 = vld [vmem:[%s15 + $0x80] sm:$0xff]
    %v613 = vld [vmem:[%s15 + $0x88] sm:$0xff]
    %v614 = vld [vmem:[%s15 + $0x90] sm:$0xff]
    %v615 = vld [vmem:[%s15 + $0x98] sm:$0xff]
    %v616 = vld [vmem:[%s15 + $0xa0] sm:$0xff]
    %v617 = vld [vmem:[%s15 + $0xa8] sm:$0xff]
    %v618 = vld [vmem:[%s15 + $0xb0] sm:$0xff]
    %v619 = vld [vmem:[%s15 + $0xb8] sm:$0xff]
    %v621 = vsel %vm186, %v596, 0
    %v624 = vsel %vm186, %v597, 0
    %v627 = vsel %vm186, %v598, 0
    %v630 = vsel %vm186, %v599, 0
    %v633 = vsel %vm186, %v600, 0
    %v636 = vsel %vm186, %v601, 0
    %v639 = vsel %vm186, %v602, 0
    %v642 = vsel %vm186, %v603, 0
    %v645 = vsel %vm186, %v604, 0
    %v648 = vsel %vm186, %v605, 0
    %v651 = vsel %vm186, %v606, 0
    %v654 = vsel %vm186, %v607, 0
    %v657 = vsel %vm186, %v608, 0
    %v660 = vsel %vm186, %v609, 0
    %v663 = vsel %vm186, %v610, 0
    %v666 = vsel %vm186, %v611, 0
    %v669 = vsel %vm186, %v612, 0
    %v672 = vsel %vm186, %v613, 0
    %v675 = vsel %vm186, %v614, 0
    %v678 = vsel %vm186, %v615, 0
    %v681 = vsel %vm186, %v616, 0
    %v684 = vsel %vm186, %v617, 0
    %v687 = vsel %vm186, %v618, 0
    %v690 = vsel %vm186, %v619, 0
    %692 = vmatpush.msra.mxu0 0.0
    %693 = vmatpush.msra.mxu0 0.0
    %694 = vmatpush.msra.mxu0 0.0
    %695 = vmatpush.msra.mxu0 0.0
    %696 = vmatpush.msra.mxu0 0.0
    %697 = vmatpush.msra.mxu0 0.0
    %698 = vmatpush.msra.mxu0 0.0
    %699 = vmatpush.msra.mxu0 0.0
    %700 = vmatpush.msra.mxu0 0.0
    %701 = vmatpush.msra.mxu0 0.0
    %702 = vmatpush.msra.mxu0 0.0
    %703 = vmatpush.msra.mxu0 0.0
    %704 = vmatpush.msra.mxu0 %v571
    %705 = vmatpush.msra.mxu0 %v570
    %706 = vmatpush.msra.mxu0 %v569
    %707 = vmatpush.msra.mxu0 %v568
    %708 = vmatmul.f32.gmra.mxu0 %v621
    %v709 = vpop.f32.mrf.mxu0
    %v710 = vadd.f32 0.0, %v709
    %711 = vmatmul.f32.gmra.mxu0 %v624
    %v712 = vpop.f32.mrf.mxu0
    %v713 = vadd.f32 0.0, %v712
    %714 = vmatmul.f32.gmra.mxu0 %v627
    %v715 = vpop.f32.mrf.mxu0
    %v716 = vadd.f32 0.0, %v715
    %717 = vmatmul.f32.gmra.mxu0 %v630
    %v718 = vpop.f32.mrf.mxu0
    %v719 = vadd.f32 0.0, %v718
    %720 = vmatmul.f32.gmra.mxu0 %v633
    %v721 = vpop.f32.mrf.mxu0
    %v722 = vadd.f32 0.0, %v721
    %723 = vmatmul.f32.gmra.mxu0 %v636
    %v724 = vpop.f32.mrf.mxu0
    %v725 = vadd.f32 0.0, %v724
    %726 = vmatmul.f32.gmra.mxu0 %v639
    %v727 = vpop.f32.mrf.mxu0
    %v728 = vadd.f32 0.0, %v727
    %729 = vmatmul.f32.gmra.mxu0 %v642
    %v730 = vpop.f32.mrf.mxu0
    %v731 = vadd.f32 0.0, %v730
    %732 = vmatmul.f32.gmra.mxu0 %v645
    %v733 = vpop.f32.mrf.mxu0
    %v734 = vadd.f32 0.0, %v733
    %735 = vmatmul.f32.gmra.mxu0 %v648
    %v736 = vpop.f32.mrf.mxu0
    %v737 = vadd.f32 0.0, %v736
    %738 = vmatmul.f32.gmra.mxu0 %v651
    %v739 = vpop.f32.mrf.mxu0
    %v740 = vadd.f32 0.0, %v739
    %741 = vmatmul.f32.gmra.mxu0 %v654
    %v742 = vpop.f32.mrf.mxu0
    %v743 = vadd.f32 0.0, %v742
    %744 = vmatmul.f32.gmra.mxu0 %v657
    %v745 = vpop.f32.mrf.mxu0
    %v746 = vadd.f32 0.0, %v745
    %747 = vmatmul.f32.gmra.mxu0 %v660
    %v748 = vpop.f32.mrf.mxu0
    %v749 = vadd.f32 0.0, %v748
    %750 = vmatmul.f32.gmra.mxu0 %v663
    %v751 = vpop.f32.mrf.mxu0
    %v752 = vadd.f32 0.0, %v751
    %753 = vmatmul.f32.gmra.mxu0 %v666
    %v754 = vpop.f32.mrf.mxu0
    %v755 = vadd.f32 0.0, %v754
    %756 = vmatmul.f32.gmra.mxu0 %v669
    %v757 = vpop.f32.mrf.mxu0
    %v758 = vadd.f32 0.0, %v757
    %759 = vmatmul.f32.gmra.mxu0 %v672
    %v760 = vpop.f32.mrf.mxu0
    %v761 = vadd.f32 0.0, %v760
    %762 = vmatmul.f32.gmra.mxu0 %v675
    %v763 = vpop.f32.mrf.mxu0
    %v764 = vadd.f32 0.0, %v763
    %765 = vmatmul.f32.gmra.mxu0 %v678
    %v766 = vpop.f32.mrf.mxu0
    %v767 = vadd.f32 0.0, %v766
    %768 = vmatmul.f32.gmra.mxu0 %v681
    %v769 = vpop.f32.mrf.mxu0
    %v770 = vadd.f32 0.0, %v769
    %771 = vmatmul.f32.gmra.mxu0 %v684
    %v772 = vpop.f32.mrf.mxu0
    %v773 = vadd.f32 0.0, %v772
    %774 = vmatmul.f32.gmra.mxu0 %v687
    %v775 = vpop.f32.mrf.mxu0
    %v776 = vadd.f32 0.0, %v775
    %777 = vmatmul.f32.gmra.mxu0 %v690
    %v778 = vpop.f32.mrf.mxu0
    %v779 = vadd.f32 0.0, %v778
    %780 = vdwg.mxu0
    %v782 = vsel %vm186, %v572, 0
    %v785 = vsel %vm186, %v573, 0
    %v788 = vsel %vm186, %v574, 0
    %v791 = vsel %vm186, %v575, 0
    %v794 = vsel %vm186, %v576, 0
    %v797 = vsel %vm186, %v577, 0
    %v800 = vsel %vm186, %v578, 0
    %v803 = vsel %vm186, %v579, 0
    %v806 = vsel %vm186, %v580, 0
    %v809 = vsel %vm186, %v581, 0
    %v812 = vsel %vm186, %v582, 0
    %v815 = vsel %vm186, %v583, 0
    %v818 = vsel %vm186, %v584, 0
    %v821 = vsel %vm186, %v585, 0
    %v824 = vsel %vm186, %v586, 0
    %v827 = vsel %vm186, %v587, 0
    %v830 = vsel %vm186, %v588, 0
    %v833 = vsel %vm186, %v589, 0
    %v836 = vsel %vm186, %v590, 0
    %v839 = vsel %vm186, %v591, 0
    %v842 = vsel %vm186, %v592, 0
    %v845 = vsel %vm186, %v593, 0
    %v848 = vsel %vm186, %v594, 0
    %v851 = vsel %vm186, %v595, 0
    %853 = vmatpush.msra.mxu0 0.0
    %854 = vmatpush.msra.mxu0 0.0
    %855 = vmatpush.msra.mxu0 0.0
    %856 = vmatpush.msra.mxu0 0.0
    %857 = vmatpush.msra.mxu0 0.0
    %858 = vmatpush.msra.mxu0 0.0
    %859 = vmatpush.msra.mxu0 0.0
    %860 = vmatpush.msra.mxu0 0.0
    %861 = vmatpush.msra.mxu0 0.0
    %862 = vmatpush.msra.mxu0 0.0
    %863 = vmatpush.msra.mxu0 0.0
    %864 = vmatpush.msra.mxu0 0.0
    %865 = vmatpush.msra.mxu0 %v328
    %866 = vmatpush.msra.mxu0 %v327
    %867 = vmatpush.msra.mxu0 %v326
    %868 = vmatpush.msra.mxu0 %v325
    %869 = vmatmul.f32.gmra.mxu0 %v782
    %v870 = vpop.f32.mrf.mxu0
    %v871 = vadd.f32 %v710, %v870
    %872 = vmatmul.f32.gmra.mxu0 %v785
    %v873 = vpop.f32.mrf.mxu0
    %v874 = vadd.f32 %v713, %v873
    %875 = vmatmul.f32.gmra.mxu0 %v788
    %v876 = vpop.f32.mrf.mxu0
    %v877 = vadd.f32 %v716, %v876
    %878 = vmatmul.f32.gmra.mxu0 %v791
    %v879 = vpop.f32.mrf.mxu0
    %v880 = vadd.f32 %v719, %v879
    %881 = vmatmul.f32.gmra.mxu0 %v794
    %v882 = vpop.f32.mrf.mxu0
    %v883 = vadd.f32 %v722, %v882
    %884 = vmatmul.f32.gmra.mxu0 %v797
    %v885 = vpop.f32.mrf.mxu0
    %v886 = vadd.f32 %v725, %v885
    %887 = vmatmul.f32.gmra.mxu0 %v800
    %v888 = vpop.f32.mrf.mxu0
    %v889 = vadd.f32 %v728, %v888
    %890 = vmatmul.f32.gmra.mxu0 %v803
    %v891 = vpop.f32.mrf.mxu0
    %v892 = vadd.f32 %v731, %v891
    %893 = vmatmul.f32.gmra.mxu0 %v806
    %v894 = vpop.f32.mrf.mxu0
    %v895 = vadd.f32 %v734, %v894
    %896 = vmatmul.f32.gmra.mxu0 %v809
    %v897 = vpop.f32.mrf.mxu0
    %v898 = vadd.f32 %v737, %v897
    %899 = vmatmul.f32.gmra.mxu0 %v812
    %v900 = vpop.f32.mrf.mxu0
    %v901 = vadd.f32 %v740, %v900
    %902 = vmatmul.f32.gmra.mxu0 %v815
    %v903 = vpop.f32.mrf.mxu0
    %v904 = vadd.f32 %v743, %v903
    %905 = vmatmul.f32.gmra.mxu0 %v818
    %v906 = vpop.f32.mrf.mxu0
    %v907 = vadd.f32 %v746, %v906
    %908 = vmatmul.f32.gmra.mxu0 %v821
    %v909 = vpop.f32.mrf.mxu0
    %v910 = vadd.f32 %v749, %v909
    %911 = vmatmul.f32.gmra.mxu0 %v824
    %v912 = vpop.f32.mrf.mxu0
    %v913 = vadd.f32 %v752, %v912
    %914 = vmatmul.f32.gmra.mxu0 %v827
    %v915 = vpop.f32.mrf.mxu0
    %v916 = vadd.f32 %v755, %v915
    %917 = vmatmul.f32.gmra.mxu0 %v830
    %v918 = vpop.f32.mrf.mxu0
    %v919 = vadd.f32 %v758, %v918
    %920 = vmatmul.f32.gmra.mxu0 %v833
    %v921 = vpop.f32.mrf.mxu0
    %v922 = vadd.f32 %v761, %v921
    %923 = vmatmul.f32.gmra.mxu0 %v836
    %v924 = vpop.f32.mrf.mxu0
    %v925 = vadd.f32 %v764, %v924
    %926 = vmatmul.f32.gmra.mxu0 %v839
    %v927 = vpop.f32.mrf.mxu0
    %v928 = vadd.f32 %v767, %v927
    %929 = vmatmul.f32.gmra.mxu0 %v842
    %v930 = vpop.f32.mrf.mxu0
    %v931 = vadd.f32 %v770, %v930
    %932 = vmatmul.f32.gmra.mxu0 %v845
    %v933 = vpop.f32.mrf.mxu0
    %v934 = vadd.f32 %v773, %v933
    %935 = vmatmul.f32.gmra.mxu0 %v848
    %v936 = vpop.f32.mrf.mxu0
    %v937 = vadd.f32 %v776, %v936
    %938 = vmatmul.f32.gmra.mxu0 %v851
    %v939 = vpop.f32.mrf.mxu0
    %v940 = vadd.f32 %v779, %v939
    %941 = vdwg.mxu0
    %v942 = vld [vmem:[%s16] sm:$0xff]
    %v943 = vld [vmem:[%s16 + $0x8] sm:$0xff]
    %v944 = vld [vmem:[%s16 + $0x10] sm:$0xff]
    %v945 = vld [vmem:[%s16 + $0x18] sm:$0xff]
    %v946 = vld [vmem:[%s16 + $0x20] sm:$0xff]
    %v947 = vld [vmem:[%s16 + $0x28] sm:$0xff]
    %v948 = vld [vmem:[%s16 + $0x30] sm:$0xff]
    %v949 = vld [vmem:[%s16 + $0x38] sm:$0xff]
    %v950 = vld [vmem:[%s16 + $0x40] sm:$0xff]
    %v951 = vld [vmem:[%s16 + $0x48] sm:$0xff]
    %v952 = vld [vmem:[%s16 + $0x50] sm:$0xff]
    %v953 = vld [vmem:[%s16 + $0x58] sm:$0xff]
    %v954 = vld [vmem:[%s16 + $0x60] sm:$0xff]
    %v955 = vld [vmem:[%s16 + $0x68] sm:$0xff]
    %v956 = vld [vmem:[%s16 + $0x70] sm:$0xff]
    %v957 = vld [vmem:[%s16 + $0x78] sm:$0xff]
    %v958 = vld [vmem:[%s16 + $0x80] sm:$0xff]
    %v959 = vld [vmem:[%s16 + $0x88] sm:$0xff]
    %v960 = vld [vmem:[%s16 + $0x90] sm:$0xff]
    %v961 = vld [vmem:[%s16 + $0x98] sm:$0xff]
    %v962 = vld [vmem:[%s16 + $0xa0] sm:$0xff]
    %v963 = vld [vmem:[%s16 + $0xa8] sm:$0xff]
    %v964 = vld [vmem:[%s16 + $0xb0] sm:$0xff]
    %v965 = vld [vmem:[%s16 + $0xb8] sm:$0xff]
    %967 = vset.pattern.permute.xlu0 0
    %968 = vperm.xlu0 %967, %v942
    %v969 = vpop.permute.xlu0 %968
    %972 = vset.pattern.permute.xlu0 0
    %973 = vperm.xlu0 %972, %v943
    %v974 = vpop.permute.xlu0 %973
    %977 = vset.pattern.permute.xlu0 0
    %978 = vperm.xlu0 %977, %v944
    %v979 = vpop.permute.xlu0 %978
    %982 = vset.pattern.permute.xlu0 0
    %983 = vperm.xlu0 %982, %v945
    %v984 = vpop.permute.xlu0 %983
    %987 = vset.pattern.permute.xlu0 0
    %988 = vperm.xlu0 %987, %v946
    %v989 = vpop.permute.xlu0 %988
    %992 = vset.pattern.permute.xlu0 0
    %993 = vperm.xlu0 %992, %v947
    %v994 = vpop.permute.xlu0 %993
    %997 = vset.pattern.permute.xlu0 0
    %998 = vperm.xlu0 %997, %v948
    %v999 = vpop.permute.xlu0 %998
    %1002 = vset.pattern.permute.xlu0 0
    %1003 = vperm.xlu0 %1002, %v949
    %v1004 = vpop.permute.xlu0 %1003
    %1007 = vset.pattern.permute.xlu0 0
    %1008 = vperm.xlu0 %1007, %v950
    %v1009 = vpop.permute.xlu0 %1008
    %1012 = vset.pattern.permute.xlu0 0
    %1013 = vperm.xlu0 %1012, %v951
    %v1014 = vpop.permute.xlu0 %1013
    %1017 = vset.pattern.permute.xlu0 0
    %1018 = vperm.xlu0 %1017, %v952
    %v1019 = vpop.permute.xlu0 %1018
    %1022 = vset.pattern.permute.xlu0 0
    %1023 = vperm.xlu0 %1022, %v953
    %v1024 = vpop.permute.xlu0 %1023
    %1027 = vset.pattern.permute.xlu0 0
    %1028 = vperm.xlu0 %1027, %v954
    %v1029 = vpop.permute.xlu0 %1028
    %1032 = vset.pattern.permute.xlu0 0
    %1033 = vperm.xlu0 %1032, %v955
    %v1034 = vpop.permute.xlu0 %1033
    %1037 = vset.pattern.permute.xlu0 0
    %1038 = vperm.xlu0 %1037, %v956
    %v1039 = vpop.permute.xlu0 %1038
    %1042 = vset.pattern.permute.xlu0 0
    %1043 = vperm.xlu0 %1042, %v957
    %v1044 = vpop.permute.xlu0 %1043
    %1047 = vset.pattern.permute.xlu0 0
    %1048 = vperm.xlu0 %1047, %v958
    %v1049 = vpop.permute.xlu0 %1048
    %1052 = vset.pattern.permute.xlu0 0
    %1053 = vperm.xlu0 %1052, %v959
    %v1054 = vpop.permute.xlu0 %1053
    %1057 = vset.pattern.permute.xlu0 0
    %1058 = vperm.xlu0 %1057, %v960
    %v1059 = vpop.permute.xlu0 %1058
    %1062 = vset.pattern.permute.xlu0 0
    %1063 = vperm.xlu0 %1062, %v961
    %v1064 = vpop.permute.xlu0 %1063
    %1067 = vset.pattern.permute.xlu0 0
    %1068 = vperm.xlu0 %1067, %v962
    %v1069 = vpop.permute.xlu0 %1068
    %1072 = vset.pattern.permute.xlu0 0
    %1073 = vperm.xlu0 %1072, %v963
    %v1074 = vpop.permute.xlu0 %1073
    %1077 = vset.pattern.permute.xlu0 0
    %1078 = vperm.xlu0 %1077, %v964
    %v1079 = vpop.permute.xlu0 %1078
    %1082 = vset.pattern.permute.xlu0 0
    %1083 = vperm.xlu0 %1082, %v965
    %v1084 = vpop.permute.xlu0 %1083
    %v1086 = vadd.f32 %v871, %v969
    %v1087 = vadd.f32 %v874, %v974
    %v1088 = vadd.f32 %v877, %v979
    %v1089 = vadd.f32 %v880, %v984
    %v1090 = vadd.f32 %v883, %v989
    %v1091 = vadd.f32 %v886, %v994
    %v1092 = vadd.f32 %v889, %v999
    %v1093 = vadd.f32 %v892, %v1004
    %v1094 = vadd.f32 %v895, %v1009
    %v1095 = vadd.f32 %v898, %v1014
    %v1096 = vadd.f32 %v901, %v1019
    %v1097 = vadd.f32 %v904, %v1024
    %v1098 = vadd.f32 %v907, %v1029
    %v1099 = vadd.f32 %v910, %v1034
    %v1100 = vadd.f32 %v913, %v1039
    %v1101 = vadd.f32 %v916, %v1044
    %v1102 = vadd.f32 %v919, %v1049
    %v1103 = vadd.f32 %v922, %v1054
    %v1104 = vadd.f32 %v925, %v1059
    %v1105 = vadd.f32 %v928, %v1064
    %v1106 = vadd.f32 %v931, %v1069
    %v1107 = vadd.f32 %v934, %v1074
    %v1108 = vadd.f32 %v937, %v1079
    %v1109 = vadd.f32 %v940, %v1084
    %v1110 = vld [vmem:[%s13] sm:$0xff]
    %v1111 = vld [vmem:[%s13 + $0x8] sm:$0xff]
    %v1112 = vld [vmem:[%s13 + $0x10] sm:$0xff]
    %v1113 = vld [vmem:[%s13 + $0x18] sm:$0xff]
    %v1114 = vld [vmem:[%s13 + $0x20] sm:$0xff]
    %v1115 = vld [vmem:[%s13 + $0x28] sm:$0xff]
    %v1116 = vld [vmem:[%s13 + $0x30] sm:$0xff]
    %v1117 = vld [vmem:[%s13 + $0x38] sm:$0xff]
    %v1119 = vsel %vm100, %v1110, 0
    %v1122 = vsel %vm100, %v1111, 0
    %v1125 = vsel %vm100, %v1112, 0
    %v1128 = vsel %vm100, %v1113, 0
    %v1131 = vsel %vm100, %v1114, 0
    %v1134 = vsel %vm100, %v1115, 0
    %v1137 = vsel %vm100, %v1116, 0
    %v1140 = vsel %vm100, %v1117, 0
    %1142 = vmatpush.msra.mxu0 0.0
    %1143 = vmatpush.msra.mxu0 0.0
    %1144 = vmatpush.msra.mxu0 0.0
    %1145 = vmatpush.msra.mxu0 0.0
    %1146 = vmatpush.msra.mxu0 0.0
    %1147 = vmatpush.msra.mxu0 0.0
    %1148 = vmatpush.msra.mxu0 0.0
    %1149 = vmatpush.msra.mxu0 0.0
    %1150 = vmatpush.msra.mxu0 0.0
    %1151 = vmatpush.msra.mxu0 0.0
    %1152 = vmatpush.msra.mxu0 0.0
    %1153 = vmatpush.msra.mxu0 0.0
    %1154 = vmatpush.msra.mxu0 0.0
    %1155 = vmatpush.msra.mxu0 0.0
    %1156 = vmatpush.msra.mxu0 0.0
    %1157 = vmatpush.msra.mxu0 %v70
    %1158 = vmatmul.f32.gmra.mxu0 %v1119
    %v1159 = vpop.f32.mrf.mxu0
    %v1160 = vadd.f32 %v1086, %v1159
    %1161 = vmatmul.f32.gmra.mxu0 %v1122
    %v1162 = vpop.f32.mrf.mxu0
    %v1163 = vadd.f32 %v1087, %v1162
    %1164 = vmatmul.f32.gmra.mxu0 %v1125
    %v1165 = vpop.f32.mrf.mxu0
    %v1166 = vadd.f32 %v1088, %v1165
    %1167 = vmatmul.f32.gmra.mxu0 %v1128
    %v1168 = vpop.f32.mrf.mxu0
    %v1169 = vadd.f32 %v1089, %v1168
    %1170 = vmatmul.f32.gmra.mxu0 %v1131
    %v1171 = vpop.f32.mrf.mxu0
    %v1172 = vadd.f32 %v1090, %v1171
    %1173 = vmatmul.f32.gmra.mxu0 %v1134
    %v1174 = vpop.f32.mrf.mxu0
    %v1175 = vadd.f32 %v1091, %v1174
    %1176 = vmatmul.f32.gmra.mxu0 %v1137
    %v1177 = vpop.f32.mrf.mxu0
    %v1178 = vadd.f32 %v1092, %v1177
    %1179 = vmatmul.f32.gmra.mxu0 %v1140
    %v1180 = vpop.f32.mrf.mxu0
    %v1181 = vadd.f32 %v1093, %v1180
    %1182 = vdwg.mxu0
    %v1183 = vmul.f32 %v1160, 0.5
    %v1184 = vmul.f32 %v1163, 0.5
    %v1185 = vmul.f32 %v1166, 0.5
    %v1186 = vmul.f32 %v1169, 0.5
    %v1187 = vmul.f32 %v1172, 0.5
    %v1188 = vmul.f32 %v1175, 0.5
    %v1189 = vmul.f32 %v1178, 0.5
    %v1190 = vmul.f32 %v1181, 0.5
    %v1191 = vtanh.pop %v1183
    %v1192 = vtanh.pop %v1184
    %v1193 = vtanh.pop %v1185
    %v1194 = vtanh.pop %v1186
    %v1195 = vtanh.pop %v1187
    %v1196 = vtanh.pop %v1188
    %v1197 = vtanh.pop %v1189
    %v1198 = vtanh.pop %v1190
    %v1199 = vmul.f32 %v1183, %v1191
    %v1200 = vmul.f32 %v1184, %v1192
    %v1201 = vmul.f32 %v1185, %v1193
    %v1202 = vmul.f32 %v1186, %v1194
    %v1203 = vmul.f32 %v1187, %v1195
    %v1204 = vmul.f32 %v1188, %v1196
    %v1205 = vmul.f32 %v1189, %v1197
    %v1206 = vmul.f32 %v1190, %v1198
    %v1207 = vadd.f32 %v1183, %v1199
    %v1208 = vadd.f32 %v1184, %v1200
    %v1209 = vadd.f32 %v1185, %v1201
    %v1210 = vadd.f32 %v1186, %v1202
    %v1211 = vadd.f32 %v1187, %v1203
    %v1212 = vadd.f32 %v1188, %v1204
    %v1213 = vadd.f32 %v1189, %v1205
    %v1214 = vadd.f32 %v1190, %v1206
    %v1215 = vld [vmem:[%s17] sm:$0xff]
    %v1216 = vld [vmem:[%s17 + $0x8] sm:$0xff]
    %v1217 = vld [vmem:[%s17 + $0x10] sm:$0xff]
    %v1218 = vld [vmem:[%s17 + $0x18] sm:$0xff]
    %v1219 = vld [vmem:[%s17 + $0x20] sm:$0xff]
    %v1220 = vld [vmem:[%s17 + $0x28] sm:$0xff]
    %v1221 = vld [vmem:[%s17 + $0x30] sm:$0xff]
    %v1222 = vld [vmem:[%s17 + $0x38] sm:$0xff]
    %v1223 = vld [vmem:[%s18] sm:$0xff]
    %v1224 = vld [vmem:[%s18 + $0x8] sm:$0xff]
    %v1225 = vld [vmem:[%s18 + $0x10] sm:$0xff]
    %v1226 = vld [vmem:[%s18 + $0x18] sm:$0xff]
    %v1227 = vld [vmem:[%s18 + $0x20] sm:$0xff]
    %v1228 = vld [vmem:[%s18 + $0x28] sm:$0xff]
    %v1229 = vld [vmem:[%s18 + $0x30] sm:$0xff]
    %v1230 = vld [vmem:[%s18 + $0x38] sm:$0xff]
    %1232 = vset.pattern.permute.xlu0 0
    %1233 = vperm.xlu0 %1232, %v1223
    %v1234 = vpop.permute.xlu0 %1233
    %1237 = vset.pattern.permute.xlu0 0
    %1238 = vperm.xlu0 %1237, %v1224
    %v1239 = vpop.permute.xlu0 %1238
    %1242 = vset.pattern.permute.xlu0 0
    %1243 = vperm.xlu0 %1242, %v1225
    %v1244 = vpop.permute.xlu0 %1243
    %1247 = vset.pattern.permute.xlu0 0
    %1248 = vperm.xlu0 %1247, %v1226
    %v1249 = vpop.permute.xlu0 %1248
    %1252 = vset.pattern.permute.xlu0 0
    %1253 = vperm.xlu0 %1252, %v1227
    %v1254 = vpop.permute.xlu0 %1253
    %1257 = vset.pattern.permute.xlu0 0
    %1258 = vperm.xlu0 %1257, %v1228
    %v1259 = vpop.permute.xlu0 %1258
    %1262 = vset.pattern.permute.xlu0 0
    %1263 = vperm.xlu0 %1262, %v1229
    %v1264 = vpop.permute.xlu0 %1263
    %1267 = vset.pattern.permute.xlu0 0
    %1268 = vperm.xlu0 %1267, %v1230
    %v1269 = vpop.permute.xlu0 %1268
    %vm1271 = vcmask 523264
    %v1273 = vsel %vm1271, %v1215, 0
    %v1276 = vsel %vm1271, %v1216, 0
    %v1279 = vsel %vm1271, %v1217, 0
    %v1282 = vsel %vm1271, %v1218, 0
    %v1285 = vsel %vm1271, %v1219, 0
    %v1288 = vsel %vm1271, %v1220, 0
    %v1291 = vsel %vm1271, %v1221, 0
    %v1294 = vsel %vm1271, %v1222, 0
    %1296 = vmatpush.msra.mxu0 0.0
    %1297 = vmatpush.msra.mxu0 0.0
    %1298 = vmatpush.msra.mxu0 0.0
    %1299 = vmatpush.msra.mxu0 0.0
    %1300 = vmatpush.msra.mxu0 0.0
    %1301 = vmatpush.msra.mxu0 0.0
    %1302 = vmatpush.msra.mxu0 0.0
    %1303 = vmatpush.msra.mxu0 0.0
    %1304 = vmatpush.msra.mxu0 %v1214
    %1305 = vmatpush.msra.mxu0 %v1213
    %1306 = vmatpush.msra.mxu0 %v1212
    %1307 = vmatpush.msra.mxu0 %v1211
    %1308 = vmatpush.msra.mxu0 %v1210
    %1309 = vmatpush.msra.mxu0 %v1209
    %1310 = vmatpush.msra.mxu0 %v1208
    %1311 = vmatpush.msra.mxu0 %v1207
    %1312 = vmatmul.f32.gmra.mxu0 %v1273
    %v1313 = vpop.f32.mrf.mxu0
    %v1314 = vadd.f32 %v1234, %v1313
    %1315 = vmatmul.f32.gmra.mxu0 %v1276
    %v1316 = vpop.f32.mrf.mxu0
    %v1317 = vadd.f32 %v1239, %v1316
    %1318 = vmatmul.f32.gmra.mxu0 %v1279
    %v1319 = vpop.f32.mrf.mxu0
    %v1320 = vadd.f32 %v1244, %v1319
    %1321 = vmatmul.f32.gmra.mxu0 %v1282
    %v1322 = vpop.f32.mrf.mxu0
    %v1323 = vadd.f32 %v1249, %v1322
    %1324 = vmatmul.f32.gmra.mxu0 %v1285
    %v1325 = vpop.f32.mrf.mxu0
    %v1326 = vadd.f32 %v1254, %v1325
    %1327 = vmatmul.f32.gmra.mxu0 %v1288
    %v1328 = vpop.f32.mrf.mxu0
    %v1329 = vadd.f32 %v1259, %v1328
    %1330 = vmatmul.f32.gmra.mxu0 %v1291
    %v1331 = vpop.f32.mrf.mxu0
    %v1332 = vadd.f32 %v1264, %v1331
    %1333 = vmatmul.f32.gmra.mxu0 %v1294
    %v1334 = vpop.f32.mrf.mxu0
    %v1335 = vadd.f32 %v1269, %v1334
    %1336 = vdwg.mxu0
    %v1337 = vmul.f32 %v1314, 0.5
    %v1338 = vmul.f32 %v1317, 0.5
    %v1339 = vmul.f32 %v1320, 0.5
    %v1340 = vmul.f32 %v1323, 0.5
    %v1341 = vmul.f32 %v1326, 0.5
    %v1342 = vmul.f32 %v1329, 0.5
    %v1343 = vmul.f32 %v1332, 0.5
    %v1344 = vmul.f32 %v1335, 0.5
    %v1345 = vtanh.pop %v1337
    %v1346 = vtanh.pop %v1338
    %v1347 = vtanh.pop %v1339
    %v1348 = vtanh.pop %v1340
    %v1349 = vtanh.pop %v1341
    %v1350 = vtanh.pop %v1342
    %v1351 = vtanh.pop %v1343
    %v1352 = vtanh.pop %v1344
    %v1353 = vmul.f32 %v1337, %v1345
    %v1354 = vmul.f32 %v1338, %v1346
    %v1355 = vmul.f32 %v1339, %v1347
    %v1356 = vmul.f32 %v1340, %v1348
    %v1357 = vmul.f32 %v1341, %v1349
    %v1358 = vmul.f32 %v1342, %v1350
    %v1359 = vmul.f32 %v1343, %v1351
    %v1360 = vmul.f32 %v1344, %v1352
    %v1361 = vadd.f32 %v1337, %v1353
    %v1362 = vadd.f32 %v1338, %v1354
    %v1363 = vadd.f32 %v1339, %v1355
    %v1364 = vadd.f32 %v1340, %v1356
    %v1365 = vadd.f32 %v1341, %v1357
    %v1366 = vadd.f32 %v1342, %v1358
    %v1367 = vadd.f32 %v1343, %v1359
    %v1368 = vadd.f32 %v1344, %v1360
    %v1369 = vld [vmem:[%s19] sm:$0xff]
    %v1370 = vld [vmem:[%s19 + $0x8] sm:$0xff]
    %v1371 = vld [vmem:[%s19 + $0x10] sm:$0xff]
    %v1372 = vld [vmem:[%s20] sm:$0xff]
    %v1373 = vld [vmem:[%s20 + $0x8] sm:$0xff]
    %v1374 = vld [vmem:[%s20 + $0x10] sm:$0xff]
    %1376 = vset.pattern.permute.xlu0 0
    %1377 = vperm.xlu0 %1376, %v1372
    %v1378 = vpop.permute.xlu0 %1377
    %1381 = vset.pattern.permute.xlu0 0
    %1382 = vperm.xlu0 %1381, %v1373
    %v1383 = vpop.permute.xlu0 %1382
    %1386 = vset.pattern.permute.xlu0 0
    %1387 = vperm.xlu0 %1386, %v1374
    %v1388 = vpop.permute.xlu0 %1387
    %v1391 = vsel %vm1271, %v1369, 0
    %v1394 = vsel %vm1271, %v1370, 0
    %v1397 = vsel %vm1271, %v1371, 0
    %1399 = vmatpush.msra.mxu0 0.0
    %1400 = vmatpush.msra.mxu0 0.0
    %1401 = vmatpush.msra.mxu0 0.0
    %1402 = vmatpush.msra.mxu0 0.0
    %1403 = vmatpush.msra.mxu0 0.0
    %1404 = vmatpush.msra.mxu0 0.0
    %1405 = vmatpush.msra.mxu0 0.0
    %1406 = vmatpush.msra.mxu0 0.0
    %1407 = vmatpush.msra.mxu0 %v1368
    %1408 = vmatpush.msra.mxu0 %v1367
    %1409 = vmatpush.msra.mxu0 %v1366
    %1410 = vmatpush.msra.mxu0 %v1365
    %1411 = vmatpush.msra.mxu0 %v1364
    %1412 = vmatpush.msra.mxu0 %v1363
    %1413 = vmatpush.msra.mxu0 %v1362
    %1414 = vmatpush.msra.mxu0 %v1361
    %1415 = vmatmul.f32.gmra.mxu0 %v1391
    %v1416 = vpop.f32.mrf.mxu0
    %v1417 = vadd.f32 %v1378, %v1416
    %1418 = vmatmul.f32.gmra.mxu0 %v1394
    %v1419 = vpop.f32.mrf.mxu0
    %v1420 = vadd.f32 %v1383, %v1419
    %1421 = vmatmul.f32.gmra.mxu0 %v1397
    %v1422 = vpop.f32.mrf.mxu0
    %v1423 = vadd.f32 %v1388, %v1422
    %1424 = vdwg.mxu0
    %v1425 = vmul.f32 %v1420, 1.442695
    %v1426 = vpow.pop %v1425
    %v1427 = vmul.f32 %v70, %v1426
    %v1428 = vadd.f32 %v1427, %v1417
    %v1429 = vadd.f32 %v1423, 0.0
    %s1430 = scalar_lea.vmem %s13, 64
    %v1431 = vld [vmem:[%s1430] sm:$0xff]
    %v1432 = vld [vmem:[%s1430 + $0x8] sm:$0xff]
    %v1433 = vld [vmem:[%s1430 + $0x10] sm:$0xff]
    %v1434 = vld [vmem:[%s1430 + $0x18] sm:$0xff]
    %v1435 = vld [vmem:[%s1430 + $0x20] sm:$0xff]
    %v1436 = vld [vmem:[%s1430 + $0x28] sm:$0xff]
    %v1437 = vld [vmem:[%s1430 + $0x30] sm:$0xff]
    %v1438 = vld [vmem:[%s1430 + $0x38] sm:$0xff]
    %v1440 = vsel %vm100, %v1431, 0
    %v1443 = vsel %vm100, %v1432, 0
    %v1446 = vsel %vm100, %v1433, 0
    %v1449 = vsel %vm100, %v1434, 0
    %v1452 = vsel %vm100, %v1435, 0
    %v1455 = vsel %vm100, %v1436, 0
    %v1458 = vsel %vm100, %v1437, 0
    %v1461 = vsel %vm100, %v1438, 0
    %1463 = vmatpush.msra.mxu0 0.0
    %1464 = vmatpush.msra.mxu0 0.0
    %1465 = vmatpush.msra.mxu0 0.0
    %1466 = vmatpush.msra.mxu0 0.0
    %1467 = vmatpush.msra.mxu0 0.0
    %1468 = vmatpush.msra.mxu0 0.0
    %1469 = vmatpush.msra.mxu0 0.0
    %1470 = vmatpush.msra.mxu0 0.0
    %1471 = vmatpush.msra.mxu0 0.0
    %1472 = vmatpush.msra.mxu0 0.0
    %1473 = vmatpush.msra.mxu0 0.0
    %1474 = vmatpush.msra.mxu0 0.0
    %1475 = vmatpush.msra.mxu0 0.0
    %1476 = vmatpush.msra.mxu0 0.0
    %1477 = vmatpush.msra.mxu0 0.0
    %1478 = vmatpush.msra.mxu0 %v1428
    %1479 = vmatmul.f32.gmra.mxu0 %v1440
    %v1480 = vpop.f32.mrf.mxu0
    %v1481 = vadd.f32 %v1094, %v1480
    %1482 = vmatmul.f32.gmra.mxu0 %v1443
    %v1483 = vpop.f32.mrf.mxu0
    %v1484 = vadd.f32 %v1095, %v1483
    %1485 = vmatmul.f32.gmra.mxu0 %v1446
    %v1486 = vpop.f32.mrf.mxu0
    %v1487 = vadd.f32 %v1096, %v1486
    %1488 = vmatmul.f32.gmra.mxu0 %v1449
    %v1489 = vpop.f32.mrf.mxu0
    %v1490 = vadd.f32 %v1097, %v1489
    %1491 = vmatmul.f32.gmra.mxu0 %v1452
    %v1492 = vpop.f32.mrf.mxu0
    %v1493 = vadd.f32 %v1098, %v1492
    %1494 = vmatmul.f32.gmra.mxu0 %v1455
    %v1495 = vpop.f32.mrf.mxu0
    %v1496 = vadd.f32 %v1099, %v1495
    %1497 = vmatmul.f32.gmra.mxu0 %v1458
    %v1498 = vpop.f32.mrf.mxu0
    %v1499 = vadd.f32 %v1100, %v1498
    %1500 = vmatmul.f32.gmra.mxu0 %v1461
    %v1501 = vpop.f32.mrf.mxu0
    %v1502 = vadd.f32 %v1101, %v1501
    %1503 = vdwg.mxu0
    %v1504 = vmul.f32 %v1481, 0.5
    %v1505 = vmul.f32 %v1484, 0.5
    %v1506 = vmul.f32 %v1487, 0.5
    %v1507 = vmul.f32 %v1490, 0.5
    %v1508 = vmul.f32 %v1493, 0.5
    %v1509 = vmul.f32 %v1496, 0.5
    %v1510 = vmul.f32 %v1499, 0.5
    %v1511 = vmul.f32 %v1502, 0.5
    %v1512 = vtanh.pop %v1504
    %v1513 = vtanh.pop %v1505
    %v1514 = vtanh.pop %v1506
    %v1515 = vtanh.pop %v1507
    %v1516 = vtanh.pop %v1508
    %v1517 = vtanh.pop %v1509
    %v1518 = vtanh.pop %v1510
    %v1519 = vtanh.pop %v1511
    %v1520 = vmul.f32 %v1504, %v1512
    %v1521 = vmul.f32 %v1505, %v1513
    %v1522 = vmul.f32 %v1506, %v1514
    %v1523 = vmul.f32 %v1507, %v1515
    %v1524 = vmul.f32 %v1508, %v1516
    %v1525 = vmul.f32 %v1509, %v1517
    %v1526 = vmul.f32 %v1510, %v1518
    %v1527 = vmul.f32 %v1511, %v1519
    %v1528 = vadd.f32 %v1504, %v1520
    %v1529 = vadd.f32 %v1505, %v1521
    %v1530 = vadd.f32 %v1506, %v1522
    %v1531 = vadd.f32 %v1507, %v1523
    %v1532 = vadd.f32 %v1508, %v1524
    %v1533 = vadd.f32 %v1509, %v1525
    %v1534 = vadd.f32 %v1510, %v1526
    %v1535 = vadd.f32 %v1511, %v1527
    %s1536 = scalar_lea.vmem %s17, 64
    %v1537 = vld [vmem:[%s1536] sm:$0xff]
    %v1538 = vld [vmem:[%s1536 + $0x8] sm:$0xff]
    %v1539 = vld [vmem:[%s1536 + $0x10] sm:$0xff]
    %v1540 = vld [vmem:[%s1536 + $0x18] sm:$0xff]
    %v1541 = vld [vmem:[%s1536 + $0x20] sm:$0xff]
    %v1542 = vld [vmem:[%s1536 + $0x28] sm:$0xff]
    %v1543 = vld [vmem:[%s1536 + $0x30] sm:$0xff]
    %v1544 = vld [vmem:[%s1536 + $0x38] sm:$0xff]
    %s1545 = scalar_lea.vmem %s18, 64
    %v1546 = vld [vmem:[%s1545] sm:$0xff]
    %v1547 = vld [vmem:[%s1545 + $0x8] sm:$0xff]
    %v1548 = vld [vmem:[%s1545 + $0x10] sm:$0xff]
    %v1549 = vld [vmem:[%s1545 + $0x18] sm:$0xff]
    %v1550 = vld [vmem:[%s1545 + $0x20] sm:$0xff]
    %v1551 = vld [vmem:[%s1545 + $0x28] sm:$0xff]
    %v1552 = vld [vmem:[%s1545 + $0x30] sm:$0xff]
    %v1553 = vld [vmem:[%s1545 + $0x38] sm:$0xff]
    %1555 = vset.pattern.permute.xlu0 0
    %1556 = vperm.xlu0 %1555, %v1546
    %v1557 = vpop.permute.xlu0 %1556
    %1560 = vset.pattern.permute.xlu0 0
    %1561 = vperm.xlu0 %1560, %v1547
    %v1562 = vpop.permute.xlu0 %1561
    %1565 = vset.pattern.permute.xlu0 0
    %1566 = vperm.xlu0 %1565, %v1548
    %v1567 = vpop.permute.xlu0 %1566
    %1570 = vset.pattern.permute.xlu0 0
    %1571 = vperm.xlu0 %1570, %v1549
    %v1572 = vpop.permute.xlu0 %1571
    %1575 = vset.pattern.permute.xlu0 0
    %1576 = vperm.xlu0 %1575, %v1550
    %v1577 = vpop.permute.xlu0 %1576
    %1580 = vset.pattern.permute.xlu0 0
    %1581 = vperm.xlu0 %1580, %v1551
    %v1582 = vpop.permute.xlu0 %1581
    %1585 = vset.pattern.permute.xlu0 0
    %1586 = vperm.xlu0 %1585, %v1552
    %v1587 = vpop.permute.xlu0 %1586
    %1590 = vset.pattern.permute.xlu0 0
    %1591 = vperm.xlu0 %1590, %v1553
    %v1592 = vpop.permute.xlu0 %1591
    %v1595 = vsel %vm1271, %v1537, 0
    %v1598 = vsel %vm1271, %v1538, 0
    %v1601 = vsel %vm1271, %v1539, 0
    %v1604 = vsel %vm1271, %v1540, 0
    %v1607 = vsel %vm1271, %v1541, 0
    %v1610 = vsel %vm1271, %v1542, 0
    %v1613 = vsel %vm1271, %v1543, 0
    %v1616 = vsel %vm1271, %v1544, 0
    %1618 = vmatpush.msra.mxu0 0.0
    %1619 = vmatpush.msra.mxu0 0.0
    %1620 = vmatpush.msra.mxu0 0.0
    %1621 = vmatpush.msra.mxu0 0.0
    %1622 = vmatpush.msra.mxu0 0.0
    %1623 = vmatpush.msra.mxu0 0.0
    %1624 = vmatpush.msra.mxu0 0.0
    %1625 = vmatpush.msra.mxu0 0.0
    %1626 = vmatpush.msra.mxu0 %v1535
    %1627 = vmatpush.msra.mxu0 %v1534
    %1628 = vmatpush.msra.mxu0 %v1533
    %1629 = vmatpush.msra.mxu0 %v1532
    %1630 = vmatpush.msra.mxu0 %v1531
    %1631 = vmatpush.msra.mxu0 %v1530
    %1632 = vmatpush.msra.mxu0 %v1529
    %1633 = vmatpush.msra.mxu0 %v1528
    %1634 = vmatmul.f32.gmra.mxu0 %v1595
    %v1635 = vpop.f32.mrf.mxu0
    %v1636 = vadd.f32 %v1557, %v1635
    %1637 = vmatmul.f32.gmra.mxu0 %v1598
    %v1638 = vpop.f32.mrf.mxu0
    %v1639 = vadd.f32 %v1562, %v1638
    %1640 = vmatmul.f32.gmra.mxu0 %v1601
    %v1641 = vpop.f32.mrf.mxu0
    %v1642 = vadd.f32 %v1567, %v1641
    %1643 = vmatmul.f32.gmra.mxu0 %v1604
    %v1644 = vpop.f32.mrf.mxu0
    %v1645 = vadd.f32 %v1572, %v1644
    %1646 = vmatmul.f32.gmra.mxu0 %v1607
    %v1647 = vpop.f32.mrf.mxu0
    %v1648 = vadd.f32 %v1577, %v1647
    %1649 = vmatmul.f32.gmra.mxu0 %v1610
    %v1650 = vpop.f32.mrf.mxu0
    %v1651 = vadd.f32 %v1582, %v1650
    %1652 = vmatmul.f32.gmra.mxu0 %v1613
    %v1653 = vpop.f32.mrf.mxu0
    %v1654 = vadd.f32 %v1587, %v1653
    %1655 = vmatmul.f32.gmra.mxu0 %v1616
    %v1656 = vpop.f32.mrf.mxu0
    %v1657 = vadd.f32 %v1592, %v1656
    %1658 = vdwg.mxu0
    %v1659 = vmul.f32 %v1636, 0.5
    %v1660 = vmul.f32 %v1639, 0.5
    %v1661 = vmul.f32 %v1642, 0.5
    %v1662 = vmul.f32 %v1645, 0.5
    %v1663 = vmul.f32 %v1648, 0.5
    %v1664 = vmul.f32 %v1651, 0.5
    %v1665 = vmul.f32 %v1654, 0.5
    %v1666 = vmul.f32 %v1657, 0.5
    %v1667 = vtanh.pop %v1659
    %v1668 = vtanh.pop %v1660
    %v1669 = vtanh.pop %v1661
    %v1670 = vtanh.pop %v1662
    %v1671 = vtanh.pop %v1663
    %v1672 = vtanh.pop %v1664
    %v1673 = vtanh.pop %v1665
    %v1674 = vtanh.pop %v1666
    %v1675 = vmul.f32 %v1659, %v1667
    %v1676 = vmul.f32 %v1660, %v1668
    %v1677 = vmul.f32 %v1661, %v1669
    %v1678 = vmul.f32 %v1662, %v1670
    %v1679 = vmul.f32 %v1663, %v1671
    %v1680 = vmul.f32 %v1664, %v1672
    %v1681 = vmul.f32 %v1665, %v1673
    %v1682 = vmul.f32 %v1666, %v1674
    %v1683 = vadd.f32 %v1659, %v1675
    %v1684 = vadd.f32 %v1660, %v1676
    %v1685 = vadd.f32 %v1661, %v1677
    %v1686 = vadd.f32 %v1662, %v1678
    %v1687 = vadd.f32 %v1663, %v1679
    %v1688 = vadd.f32 %v1664, %v1680
    %v1689 = vadd.f32 %v1665, %v1681
    %v1690 = vadd.f32 %v1666, %v1682
    %s1691 = scalar_lea.vmem %s19, 24
    %v1692 = vld [vmem:[%s1691] sm:$0xff]
    %v1693 = vld [vmem:[%s1691 + $0x8] sm:$0xff]
    %v1694 = vld [vmem:[%s1691 + $0x10] sm:$0xff]
    %s1695 = scalar_lea.vmem %s20, 24
    %v1696 = vld [vmem:[%s1695] sm:$0xff]
    %v1697 = vld [vmem:[%s1695 + $0x8] sm:$0xff]
    %v1698 = vld [vmem:[%s1695 + $0x10] sm:$0xff]
    %1700 = vset.pattern.permute.xlu0 0
    %1701 = vperm.xlu0 %1700, %v1696
    %v1702 = vpop.permute.xlu0 %1701
    %1705 = vset.pattern.permute.xlu0 0
    %1706 = vperm.xlu0 %1705, %v1697
    %v1707 = vpop.permute.xlu0 %1706
    %1710 = vset.pattern.permute.xlu0 0
    %1711 = vperm.xlu0 %1710, %v1698
    %v1712 = vpop.permute.xlu0 %1711
    %v1715 = vsel %vm1271, %v1692, 0
    %v1718 = vsel %vm1271, %v1693, 0
    %v1721 = vsel %vm1271, %v1694, 0
    %1723 = vmatpush.msra.mxu0 0.0
    %1724 = vmatpush.msra.mxu0 0.0
    %1725 = vmatpush.msra.mxu0 0.0
    %1726 = vmatpush.msra.mxu0 0.0
    %1727 = vmatpush.msra.mxu0 0.0
    %1728 = vmatpush.msra.mxu0 0.0
    %1729 = vmatpush.msra.mxu0 0.0
    %1730 = vmatpush.msra.mxu0 0.0
    %1731 = vmatpush.msra.mxu0 %v1690
    %1732 = vmatpush.msra.mxu0 %v1689
    %1733 = vmatpush.msra.mxu0 %v1688
    %1734 = vmatpush.msra.mxu0 %v1687
    %1735 = vmatpush.msra.mxu0 %v1686
    %1736 = vmatpush.msra.mxu0 %v1685
    %1737 = vmatpush.msra.mxu0 %v1684
    %1738 = vmatpush.msra.mxu0 %v1683
    %1739 = vmatmul.f32.gmra.mxu0 %v1715
    %v1740 = vpop.f32.mrf.mxu0
    %v1741 = vadd.f32 %v1702, %v1740
    %1742 = vmatmul.f32.gmra.mxu0 %v1718
    %v1743 = vpop.f32.mrf.mxu0
    %v1744 = vadd.f32 %v1707, %v1743
    %1745 = vmatmul.f32.gmra.mxu0 %v1721
    %v1746 = vpop.f32.mrf.mxu0
    %v1747 = vadd.f32 %v1712, %v1746
    %1748 = vdwg.mxu0
    %v1749 = vmul.f32 %v1744, 1.442695
    %v1750 = vpow.pop %v1749
    %v1751 = vmul.f32 %v1428, %v1750
    %v1752 = vadd.f32 %v1751, %v1741
    %v1753 = vadd.f32 %v1429, %v1747
    %s1754 = scalar_lea.vmem %s13, 128
    %v1755 = vld [vmem:[%s1754] sm:$0xff]
    %v1756 = vld [vmem:[%s1754 + $0x8] sm:$0xff]
    %v1757 = vld [vmem:[%s1754 + $0x10] sm:$0xff]
    %v1758 = vld [vmem:[%s1754 + $0x18] sm:$0xff]
    %v1759 = vld [vmem:[%s1754 + $0x20] sm:$0xff]
    %v1760 = vld [vmem:[%s1754 + $0x28] sm:$0xff]
    %v1761 = vld [vmem:[%s1754 + $0x30] sm:$0xff]
    %v1762 = vld [vmem:[%s1754 + $0x38] sm:$0xff]
    %v1764 = vsel %vm100, %v1755, 0
    %v1767 = vsel %vm100, %v1756, 0
    %v1770 = vsel %vm100, %v1757, 0
    %v1773 = vsel %vm100, %v1758, 0
    %v1776 = vsel %vm100, %v1759, 0
    %v1779 = vsel %vm100, %v1760, 0
    %v1782 = vsel %vm100, %v1761, 0
    %v1785 = vsel %vm100, %v1762, 0
    %1787 = vmatpush.msra.mxu0 0.0
    %1788 = vmatpush.msra.mxu0 0.0
    %1789 = vmatpush.msra.mxu0 0.0
    %1790 = vmatpush.msra.mxu0 0.0
    %1791 = vmatpush.msra.mxu0 0.0
    %1792 = vmatpush.msra.mxu0 0.0
    %1793 = vmatpush.msra.mxu0 0.0
    %1794 = vmatpush.msra.mxu0 0.0
    %1795 = vmatpush.msra.mxu0 0.0
    %1796 = vmatpush.msra.mxu0 0.0
    %1797 = vmatpush.msra.mxu0 0.0
    %1798 = vmatpush.msra.mxu0 0.0
    %1799 = vmatpush.msra.mxu0 0.0
    %1800 = vmatpush.msra.mxu0 0.0
    %1801 = vmatpush.msra.mxu0 0.0
    %1802 = vmatpush.msra.mxu0 %v1752
    %1803 = vmatmul.f32.gmra.mxu0 %v1764
    %v1804 = vpop.f32.mrf.mxu0
    %v1805 = vadd.f32 %v1102, %v1804
    %1806 = vmatmul.f32.gmra.mxu0 %v1767
    %v1807 = vpop.f32.mrf.mxu0
    %v1808 = vadd.f32 %v1103, %v1807
    %1809 = vmatmul.f32.gmra.mxu0 %v1770
    %v1810 = vpop.f32.mrf.mxu0
    %v1811 = vadd.f32 %v1104, %v1810
    %1812 = vmatmul.f32.gmra.mxu0 %v1773
    %v1813 = vpop.f32.mrf.mxu0
    %v1814 = vadd.f32 %v1105, %v1813
    %1815 = vmatmul.f32.gmra.mxu0 %v1776
    %v1816 = vpop.f32.mrf.mxu0
    %v1817 = vadd.f32 %v1106, %v1816
    %1818 = vmatmul.f32.gmra.mxu0 %v1779
    %v1819 = vpop.f32.mrf.mxu0
    %v1820 = vadd.f32 %v1107, %v1819
    %1821 = vmatmul.f32.gmra.mxu0 %v1782
    %v1822 = vpop.f32.mrf.mxu0
    %v1823 = vadd.f32 %v1108, %v1822
    %1824 = vmatmul.f32.gmra.mxu0 %v1785
    %v1825 = vpop.f32.mrf.mxu0
    %v1826 = vadd.f32 %v1109, %v1825
    %1827 = vdwg.mxu0
    %v1828 = vmul.f32 %v1805, 0.5
    %v1829 = vmul.f32 %v1808, 0.5
    %v1830 = vmul.f32 %v1811, 0.5
    %v1831 = vmul.f32 %v1814, 0.5
    %v1832 = vmul.f32 %v1817, 0.5
    %v1833 = vmul.f32 %v1820, 0.5
    %v1834 = vmul.f32 %v1823, 0.5
    %v1835 = vmul.f32 %v1826, 0.5
    %v1836 = vtanh.pop %v1828
    %v1837 = vtanh.pop %v1829
    %v1838 = vtanh.pop %v1830
    %v1839 = vtanh.pop %v1831
    %v1840 = vtanh.pop %v1832
    %v1841 = vtanh.pop %v1833
    %v1842 = vtanh.pop %v1834
    %v1843 = vtanh.pop %v1835
    %v1844 = vmul.f32 %v1828, %v1836
    %v1845 = vmul.f32 %v1829, %v1837
    %v1846 = vmul.f32 %v1830, %v1838
    %v1847 = vmul.f32 %v1831, %v1839
    %v1848 = vmul.f32 %v1832, %v1840
    %v1849 = vmul.f32 %v1833, %v1841
    %v1850 = vmul.f32 %v1834, %v1842
    %v1851 = vmul.f32 %v1835, %v1843
    %v1852 = vadd.f32 %v1828, %v1844
    %v1853 = vadd.f32 %v1829, %v1845
    %v1854 = vadd.f32 %v1830, %v1846
    %v1855 = vadd.f32 %v1831, %v1847
    %v1856 = vadd.f32 %v1832, %v1848
    %v1857 = vadd.f32 %v1833, %v1849
    %v1858 = vadd.f32 %v1834, %v1850
    %v1859 = vadd.f32 %v1835, %v1851
    %s1860 = scalar_lea.vmem %s17, 128
    %v1861 = vld [vmem:[%s1860] sm:$0xff]
    %v1862 = vld [vmem:[%s1860 + $0x8] sm:$0xff]
    %v1863 = vld [vmem:[%s1860 + $0x10] sm:$0xff]
    %v1864 = vld [vmem:[%s1860 + $0x18] sm:$0xff]
    %v1865 = vld [vmem:[%s1860 + $0x20] sm:$0xff]
    %v1866 = vld [vmem:[%s1860 + $0x28] sm:$0xff]
    %v1867 = vld [vmem:[%s1860 + $0x30] sm:$0xff]
    %v1868 = vld [vmem:[%s1860 + $0x38] sm:$0xff]
    %s1869 = scalar_lea.vmem %s18, 128
    %v1870 = vld [vmem:[%s1869] sm:$0xff]
    %v1871 = vld [vmem:[%s1869 + $0x8] sm:$0xff]
    %v1872 = vld [vmem:[%s1869 + $0x10] sm:$0xff]
    %v1873 = vld [vmem:[%s1869 + $0x18] sm:$0xff]
    %v1874 = vld [vmem:[%s1869 + $0x20] sm:$0xff]
    %v1875 = vld [vmem:[%s1869 + $0x28] sm:$0xff]
    %v1876 = vld [vmem:[%s1869 + $0x30] sm:$0xff]
    %v1877 = vld [vmem:[%s1869 + $0x38] sm:$0xff]
    %1879 = vset.pattern.permute.xlu0 0
    %1880 = vperm.xlu0 %1879, %v1870
    %v1881 = vpop.permute.xlu0 %1880
    %1884 = vset.pattern.permute.xlu0 0
    %1885 = vperm.xlu0 %1884, %v1871
    %v1886 = vpop.permute.xlu0 %1885
    %1889 = vset.pattern.permute.xlu0 0
    %1890 = vperm.xlu0 %1889, %v1872
    %v1891 = vpop.permute.xlu0 %1890
    %1894 = vset.pattern.permute.xlu0 0
    %1895 = vperm.xlu0 %1894, %v1873
    %v1896 = vpop.permute.xlu0 %1895
    %1899 = vset.pattern.permute.xlu0 0
    %1900 = vperm.xlu0 %1899, %v1874
    %v1901 = vpop.permute.xlu0 %1900
    %1904 = vset.pattern.permute.xlu0 0
    %1905 = vperm.xlu0 %1904, %v1875
    %v1906 = vpop.permute.xlu0 %1905
    %1909 = vset.pattern.permute.xlu0 0
    %1910 = vperm.xlu0 %1909, %v1876
    %v1911 = vpop.permute.xlu0 %1910
    %1914 = vset.pattern.permute.xlu0 0
    %1915 = vperm.xlu0 %1914, %v1877
    %v1916 = vpop.permute.xlu0 %1915
    %v1919 = vsel %vm1271, %v1861, 0
    %v1922 = vsel %vm1271, %v1862, 0
    %v1925 = vsel %vm1271, %v1863, 0
    %v1928 = vsel %vm1271, %v1864, 0
    %v1931 = vsel %vm1271, %v1865, 0
    %v1934 = vsel %vm1271, %v1866, 0
    %v1937 = vsel %vm1271, %v1867, 0
    %v1940 = vsel %vm1271, %v1868, 0
    %1942 = vmatpush.msra.mxu0 0.0
    %1943 = vmatpush.msra.mxu0 0.0
    %1944 = vmatpush.msra.mxu0 0.0
    %1945 = vmatpush.msra.mxu0 0.0
    %1946 = vmatpush.msra.mxu0 0.0
    %1947 = vmatpush.msra.mxu0 0.0
    %1948 = vmatpush.msra.mxu0 0.0
    %1949 = vmatpush.msra.mxu0 0.0
    %1950 = vmatpush.msra.mxu0 %v1859
    %1951 = vmatpush.msra.mxu0 %v1858
    %1952 = vmatpush.msra.mxu0 %v1857
    %1953 = vmatpush.msra.mxu0 %v1856
    %1954 = vmatpush.msra.mxu0 %v1855
    %1955 = vmatpush.msra.mxu0 %v1854
    %1956 = vmatpush.msra.mxu0 %v1853
    %1957 = vmatpush.msra.mxu0 %v1852
    %1958 = vmatmul.f32.gmra.mxu0 %v1919
    %v1959 = vpop.f32.mrf.mxu0
    %v1960 = vadd.f32 %v1881, %v1959
    %1961 = vmatmul.f32.gmra.mxu0 %v1922
    %v1962 = vpop.f32.mrf.mxu0
    %v1963 = vadd.f32 %v1886, %v1962
    %1964 = vmatmul.f32.gmra.mxu0 %v1925
    %v1965 = vpop.f32.mrf.mxu0
    %v1966 = vadd.f32 %v1891, %v1965
    %1967 = vmatmul.f32.gmra.mxu0 %v1928
    %v1968 = vpop.f32.mrf.mxu0
    %v1969 = vadd.f32 %v1896, %v1968
    %1970 = vmatmul.f32.gmra.mxu0 %v1931
    %v1971 = vpop.f32.mrf.mxu0
    %v1972 = vadd.f32 %v1901, %v1971
    %1973 = vmatmul.f32.gmra.mxu0 %v1934
    %v1974 = vpop.f32.mrf.mxu0
    %v1975 = vadd.f32 %v1906, %v1974
    %1976 = vmatmul.f32.gmra.mxu0 %v1937
    %v1977 = vpop.f32.mrf.mxu0
    %v1978 = vadd.f32 %v1911, %v1977
    %1979 = vmatmul.f32.gmra.mxu0 %v1940
    %v1980 = vpop.f32.mrf.mxu0
    %v1981 = vadd.f32 %v1916, %v1980
    %1982 = vdwg.mxu0
    %v1983 = vmul.f32 %v1960, 0.5
    %v1984 = vmul.f32 %v1963, 0.5
    %v1985 = vmul.f32 %v1966, 0.5
    %v1986 = vmul.f32 %v1969, 0.5
    %v1987 = vmul.f32 %v1972, 0.5
    %v1988 = vmul.f32 %v1975, 0.5
    %v1989 = vmul.f32 %v1978, 0.5
    %v1990 = vmul.f32 %v1981, 0.5
    %v1991 = vtanh.pop %v1983
    %v1992 = vtanh.pop %v1984
    %v1993 = vtanh.pop %v1985
    %v1994 = vtanh.pop %v1986
    %v1995 = vtanh.pop %v1987
    %v1996 = vtanh.pop %v1988
    %v1997 = vtanh.pop %v1989
    %v1998 = vtanh.pop %v1990
    %v1999 = vmul.f32 %v1983, %v1991
    %v2000 = vmul.f32 %v1984, %v1992
    %v2001 = vmul.f32 %v1985, %v1993
    %v2002 = vmul.f32 %v1986, %v1994
    %v2003 = vmul.f32 %v1987, %v1995
    %v2004 = vmul.f32 %v1988, %v1996
    %v2005 = vmul.f32 %v1989, %v1997
    %v2006 = vmul.f32 %v1990, %v1998
    %v2007 = vadd.f32 %v1983, %v1999
    %v2008 = vadd.f32 %v1984, %v2000
    %v2009 = vadd.f32 %v1985, %v2001
    %v2010 = vadd.f32 %v1986, %v2002
    %v2011 = vadd.f32 %v1987, %v2003
    %v2012 = vadd.f32 %v1988, %v2004
    %v2013 = vadd.f32 %v1989, %v2005
    %v2014 = vadd.f32 %v1990, %v2006
    %s2015 = scalar_lea.vmem %s19, 48
    %v2016 = vld [vmem:[%s2015] sm:$0xff]
    %v2017 = vld [vmem:[%s2015 + $0x8] sm:$0xff]
    %v2018 = vld [vmem:[%s2015 + $0x10] sm:$0xff]
    %s2019 = scalar_lea.vmem %s20, 48
    %v2020 = vld [vmem:[%s2019] sm:$0xff]
    %v2021 = vld [vmem:[%s2019 + $0x8] sm:$0xff]
    %v2022 = vld [vmem:[%s2019 + $0x10] sm:$0xff]
    %2024 = vset.pattern.permute.xlu0 0
    %2025 = vperm.xlu0 %2024, %v2020
    %v2026 = vpop.permute.xlu0 %2025
    %2029 = vset.pattern.permute.xlu0 0
    %2030 = vperm.xlu0 %2029, %v2021
    %v2031 = vpop.permute.xlu0 %2030
    %2034 = vset.pattern.permute.xlu0 0
    %2035 = vperm.xlu0 %2034, %v2022
    %v2036 = vpop.permute.xlu0 %2035
    %v2039 = vsel %vm1271, %v2016, 0
    %v2042 = vsel %vm1271, %v2017, 0
    %v2045 = vsel %vm1271, %v2018, 0
    %2047 = vmatpush.msra.mxu0 0.0
    %2048 = vmatpush.msra.mxu0 0.0
    %2049 = vmatpush.msra.mxu0 0.0
    %2050 = vmatpush.msra.mxu0 0.0
    %2051 = vmatpush.msra.mxu0 0.0
    %2052 = vmatpush.msra.mxu0 0.0
    %2053 = vmatpush.msra.mxu0 0.0
    %2054 = vmatpush.msra.mxu0 0.0
    %2055 = vmatpush.msra.mxu0 %v2014
    %2056 = vmatpush.msra.mxu0 %v2013
    %2057 = vmatpush.msra.mxu0 %v2012
    %2058 = vmatpush.msra.mxu0 %v2011
    %2059 = vmatpush.msra.mxu0 %v2010
    %2060 = vmatpush.msra.mxu0 %v2009
    %2061 = vmatpush.msra.mxu0 %v2008
    %2062 = vmatpush.msra.mxu0 %v2007
    %2063 = vmatmul.f32.gmra.mxu0 %v2039
    %v2064 = vpop.f32.mrf.mxu0
    %v2065 = vadd.f32 %v2026, %v2064
    %2066 = vmatmul.f32.gmra.mxu0 %v2042
    %v2067 = vpop.f32.mrf.mxu0
    %v2068 = vadd.f32 %v2031, %v2067
    %2069 = vmatmul.f32.gmra.mxu0 %v2045
    %v2070 = vpop.f32.mrf.mxu0
    %v2071 = vadd.f32 %v2036, %v2070
    %2072 = vdwg.mxu0
    %v2073 = vmul.f32 %v2068, 1.442695
    %v2074 = vpow.pop %v2073
    %v2075 = vmul.f32 %v1752, %v2074
    %v2076 = vadd.f32 %v2075, %v2065
    %v2077 = vadd.f32 %v1753, %v2071
    %v2078 = vmul.f32 %v2076, %v2076
    %v2080 = vsel %vm100, 1.0, 0
    %2082 = vmatpush.msra.mxu0 0.0
    %2083 = vmatpush.msra.mxu0 0.0
    %2084 = vmatpush.msra.mxu0 0.0
    %2085 = vmatpush.msra.mxu0 0.0
    %2086 = vmatpush.msra.mxu0 0.0
    %2087 = vmatpush.msra.mxu0 0.0
    %2088 = vmatpush.msra.mxu0 0.0
    %2089 = vmatpush.msra.mxu0 0.0
    %2090 = vmatpush.msra.mxu0 0.0
    %2091 = vmatpush.msra.mxu0 0.0
    %2092 = vmatpush.msra.mxu0 0.0
    %2093 = vmatpush.msra.mxu0 0.0
    %2094 = vmatpush.msra.mxu0 0.0
    %2095 = vmatpush.msra.mxu0 0.0
    %2096 = vmatpush.msra.mxu0 0.0
    %2097 = vmatpush.msra.mxu0 %v2078
    %2098 = vmatmul.f32.gmra.mxu0 %v2080
    %v2099 = vpop.f32.mrf.mxu0
    %v2100 = vadd.f32 0.0, %v2099
    %2101 = vdwg.mxu0
    %v2102 = vmul.f32 %v2100, -0.5
    %v2103 = vsub.f32 %v2102, 7.351508
    %v2104 = vadd.f32 %v2103, %v2077
    %2105 = vst [vmem:[#allocation2] sm:$0x1] %v2104
    // Predicated region
    $region86: #{tpu_custom_call.1} parent=1 // pred_check
      _
    $region87: #{tpu_custom_call.1} parent=1 // pred_check_branch
      %2107 = sbr.rel (0) target = $region89
    $region88: #{tpu_custom_call.1} parent=1 // pred_region
      %2109 = vsyncadd [#allocation3], 0
      %s2111 = sshll.u32 [#allocation2], 4
      %s2112 = int_to_ptr.vmem [resolvable:$true] %s2111
      %s2113 = sshll.u32 %s21, 4
      %s2114 = int_to_ptr.hbm [resolvable:$true] %s2113
      %2116 = dma.vmem_to_hbm [thread:$0]  %s2112, 16, %s2114, [#allocation3]
    $region89: #{tpu_custom_call.1} parent=1 // pred_fallthru
      _
    // Predicated region
    $region90: #{tpu_custom_call.1} parent=1 // pred_check
      _
    $region91: #{tpu_custom_call.1} parent=1 // pred_check_branch
      %2118 = sbr.rel (0) target = $region93
    $region92: #{tpu_custom_call.1} parent=1 // pred_region
      %2120 = dma.done [#allocation3], 16
    $region93: #{tpu_custom_call.1} parent=1 // pred_fallthru
      _
    %2121 = vsyncpa [#allocation3], 1

</llo_original>
